<compile_context>
chip_gen: v7x
topology: tpu7x:2x2x1
jax: 0.10.0
libtpu: 0.0.40
codegen_flags: <defaults>
</compile_context>

<pallas_src>
import jax
import jax.numpy as jnp
from jax import lax
from jax.experimental import pallas as pl
from jax.experimental.pallas import tpu as pltpu

jax.config.update("jax_default_matmul_precision", "highest")

SELU_ALPHA = 1.6732632423543772
SELU_SCALE = 1.0507009873554805


def _selu(x):
    return SELU_SCALE * jnp.where(x > 0, x, SELU_ALPHA * (jnp.exp(x) - 1.0))


def net_kernel(x_ref,
               w0_ref, b0_ref,      # [in, 20],       [1, 20]
               w1_ref, b1_ref,      # [20, 14],       [1, 14]   (policy||value hidden, fused)
               w2_ref, b2_ref,      # [14, out+1],    [1, out+1] (block-diagonal heads, fused)
               out_ref):            # [tile_b, out+1]  = policy || value
    x = x_ref[...]

    # common layer
    h = _selu(jnp.dot(x, w0_ref[...], preferred_element_type=jnp.float32)
              + b0_ref[...])

    # fused policy/value hidden layers (columns 0:10 = h_p, 10:14 = h_v)
    h_pv = _selu(jnp.dot(h, w1_ref[...], preferred_element_type=jnp.float32)
                 + b1_ref[...])

    # fused block-diagonal heads: columns 0:out = policy logits, col out = value
    pv = (jnp.dot(h_pv, w2_ref[...], preferred_element_type=jnp.float32)
          + b2_ref[...])

    # masked softmax over the policy columns; value column passes through raw.
    ncols = out_ref.shape[-1]
    col = lax.broadcasted_iota(jnp.int32, (1, ncols), 1)
    is_policy = col < (ncols - 1)

    masked_logits = jnp.where(is_policy, pv, -jnp.inf)
    m = jnp.max(masked_logits, axis=-1, keepdims=True)
    e = jnp.exp(masked_logits - m)            # value column -> exp(-inf) = 0 exactly
    denom = jnp.sum(e, axis=-1, keepdims=True)
    policy = e / denom                        # exact f32 divide: rows sum to 1

    out_ref[...] = jnp.where(is_policy, policy, pv)


def _prepare_fused_params(params):
    """Host/XLA-side weight prep: transpose + fuse, done once outside the kernel."""
    output_dim = params["w_policy_out"].shape[0]
    ph = params["w_policy_out"].shape[1]   # policy hidden (10)
    vh = params["w_value_out"].shape[1]    # value hidden (4)

    w0t = params["w_common0"].T                                   # [in, 20]
    b0 = params["b_common0"]                                      # [1, 20]

    w1 = jnp.concatenate([params["w_policy0"].T,
                          params["w_value0"].T], axis=1)          # [20, 14]
    b1 = jnp.concatenate([params["b_policy0"],
                          params["b_value0"]], axis=1)            # [1, 14]

    w2 = jnp.zeros((ph + vh, output_dim + 1), jnp.float32)        # block-diagonal
    w2 = w2.at[:ph, :output_dim].set(params["w_policy_out"].T)
    w2 = w2.at[ph:, output_dim:].set(params["w_value_out"].T)
    b2 = jnp.concatenate([params["b_policy_out"],
                          params["b_value_out"]], axis=1)         # [1, out+1]

    return w0t, b0, w1, b1, w2, b2, output_dim


def net_forward(x, params, tile_b=512):
    """x: [B, input_dim]; params: dict of weights/biases (see init_params)."""
    B, input_dim = x.shape
    w0t, b0, w1, b1, w2, b2, output_dim = _prepare_fused_params(params)

    tb = min(tile_b, B)
    grid = (pl.cdiv(B, tb),)

    batch_map = lambda i: (i, 0)       # tile along batch
    resident_map = lambda i: (0, 0)    # weights/biases stay in VMEM across steps

    out = pl.pallas_call(
        net_kernel,
        out_shape=jax.ShapeDtypeStruct((B, output_dim + 1), jnp.float32),
        grid=grid,
        in_specs=[
            pl.BlockSpec((tb, input_dim), batch_map),
            pl.BlockSpec(w0t.shape, resident_map),
            pl.BlockSpec(b0.shape, resident_map),
            pl.BlockSpec(w1.shape, resident_map),
            pl.BlockSpec(b1.shape, resident_map),
            pl.BlockSpec(w2.shape, resident_map),
            pl.BlockSpec(b2.shape, resident_map),
        ],
        out_specs=pl.BlockSpec((tb, output_dim + 1), batch_map),
        compiler_params=pltpu.CompilerParams(
            dimension_semantics=("parallel",),
        ),
    )(x, w0t, b0, w1, b1, w2, b2)

    policy = out[:, :output_dim]
    value = out[:, output_dim:]
    return policy, value


def init_params(key, input_dim, output_dim,
                common=20, policy_hidden=10, value_hidden=4):
    """Deterministic PyTorch-Linear-style init (uniform +-1/sqrt(fan_in))."""
    def linear(k, out_f, in_f):
        k_w, k_b = jax.random.split(k)
        bound = 1.0 / jnp.sqrt(jnp.float32(in_f))
        w = jax.random.uniform(k_w, (out_f, in_f), jnp.float32, -bound, bound)
        b = jax.random.uniform(k_b, (1, out_f), jnp.float32, -bound, bound)
        return w, b

    keys = jax.random.split(key, 5)
    w0, b0 = linear(keys[0], common, input_dim)
    wp, bp = linear(keys[1], policy_hidden, common)
    wv, bv = linear(keys[2], value_hidden, common)
    wpo, bpo = linear(keys[3], output_dim, policy_hidden)
    wvo, bvo = linear(keys[4], 1, value_hidden)
    return {
        "w_common0": w0, "b_common0": b0,
        "w_policy0": wp, "b_policy0": bp,
        "w_value0": wv, "b_value0": bv,
        "w_policy_out": wpo, "b_policy_out": bpo,
        "w_value_out": wvo, "b_value_out": bvo,
    }


def _reference_forward(x, p):
    """Pure-JAX reference for a sanity check."""
    h = _selu(x @ p["w_common0"].T + p["b_common0"])
    h_p = _selu(h @ p["w_policy0"].T + p["b_policy0"])
    h_v = _selu(h @ p["w_value0"].T + p["b_value0"])
    logits = h_p @ p["w_policy_out"].T + p["b_policy_out"]
    policy = jax.nn.softmax(logits, axis=-1)
    value = h_v @ p["w_value_out"].T + p["b_value_out"]
    return policy, value


if __name__ == "__main__":
    key = jax.random.PRNGKey(0)
    k_params, k_x = jax.random.split(key)

    batch = 32
    input_dim = 16
    output_dim = 10

    params = init_params(k_params, input_dim, output_dim)
    x = jax.random.normal(k_x, (batch, input_dim), jnp.float32)

    # tile_b=16 -> 2 grid steps at this small batch, exercising the pipeline.
    policy, value = net_forward(x, params, tile_b=16)
    policy = jax.block_until_ready(policy)
    value = jax.block_until_ready(value)

    ref_policy, ref_value = _reference_forward(x, params)
    assert policy.shape == (batch, output_dim)
    assert value.shape == (batch, 1)
    assert jnp.allclose(policy, ref_policy, atol=1e-3, rtol=1e-3)
    # Exact-divide softmax: rows sum to 1 to float32 rounding.
    assert jnp.allclose(jnp.sum(policy, axis=-1), 1.0, atol=1e-4)
    assert jnp.allclose(value, ref_value, atol=1e-4, rtol=1e-4)

    print("KERNEL_OK")
</pallas_src>

<mosaic_0001>
module attributes {stable_mosaic.version = 11 : i64} {
  func.func @net_kernel(%arg0: i32, %arg1: memref<16x16xf32, #tpu.memory_space<vmem>>, %arg2: memref<16x20xf32, #tpu.memory_space<vmem>>, %arg3: memref<1x20xf32, #tpu.memory_space<vmem>>, %arg4: memref<20x14xf32, #tpu.memory_space<vmem>>, %arg5: memref<1x14xf32, #tpu.memory_space<vmem>>, %arg6: memref<14x11xf32, #tpu.memory_space<vmem>>, %arg7: memref<1x11xf32, #tpu.memory_space<vmem>>, %arg8: memref<16x11xf32, #tpu.memory_space<vmem>>) attributes {dimension_semantics = [#tpu.dimension_semantics<parallel>], iteration_bounds = array<i64: 2>, scalar_prefetch = 0 : i64, scratch_operands = 0 : i64, tpu.core_type = #tpu.core_type<tc>, window_params = [{transform_indices = @transform_0, window_bounds = array<i64: 16, 16>}, {pipeline_mode = #tpu.pipeline_mode<synchronous>, transform_indices = @transform_1, window_bounds = array<i64: 16, 20>}, {pipeline_mode = #tpu.pipeline_mode<synchronous>, transform_indices = @transform_2, window_bounds = array<i64: 1, 20>}, {pipeline_mode = #tpu.pipeline_mode<synchronous>, transform_indices = @transform_3, window_bounds = array<i64: 20, 14>}, {pipeline_mode = #tpu.pipeline_mode<synchronous>, transform_indices = @transform_4, window_bounds = array<i64: 1, 14>}, {pipeline_mode = #tpu.pipeline_mode<synchronous>, transform_indices = @transform_5, window_bounds = array<i64: 14, 11>}, {pipeline_mode = #tpu.pipeline_mode<synchronous>, transform_indices = @transform_6, window_bounds = array<i64: 1, 11>}, {transform_indices = @transform_7, window_bounds = array<i64: 16, 11>}]} {
    %c0 = arith.constant 0 : index
    %c0_0 = arith.constant 0 : index
    %0 = vector.load %arg1[%c0, %c0_0] : memref<16x16xf32, #tpu.memory_space<vmem>>, vector<16x16xf32>
    %c0_1 = arith.constant 0 : index
    %c0_2 = arith.constant 0 : index
    %1 = vector.load %arg2[%c0_1, %c0_2] : memref<16x20xf32, #tpu.memory_space<vmem>>, vector<16x20xf32>
    %cst = arith.constant dense<0.000000e+00> : vector<16x20xf32>
    %2 = tpu.matmul %0, %1, %cst {dimension_numbers = #tpu.dot_dimension_numbers<[1], [0], [0], [1], [0, 0, 1, 1], [], []>, precision = #tpu.contract_precision<fp32>} : vector<16x16xf32>, vector<16x20xf32>, vector<16x20xf32> -> vector<16x20xf32>
    %c0_3 = arith.constant 0 : index
    %c0_4 = arith.constant 0 : index
    %3 = vector.load %arg3[%c0_3, %c0_4] : memref<1x20xf32, #tpu.memory_space<vmem>>, vector<1x20xf32>
    %4 = vector.broadcast %3 : vector<1x20xf32> to vector<16x20xf32>
    %5 = arith.addf %2, %4 : vector<16x20xf32>
    %cst_5 = arith.constant 0.000000e+00 : f32
    %6 = vector.broadcast %cst_5 : f32 to vector<16x20xf32>
    %7 = arith.cmpf ogt, %5, %6 : vector<16x20xf32>
    %8 = math.exp %5 : vector<16x20xf32>
    %cst_6 = arith.constant 1.000000e+00 : f32
    %9 = vector.broadcast %cst_6 : f32 to vector<16x20xf32>
    %10 = arith.subf %8, %9 : vector<16x20xf32>
    %cst_7 = arith.constant 1.67326319 : f32
    %11 = vector.broadcast %cst_7 : f32 to vector<16x20xf32>
    %12 = arith.mulf %11, %10 : vector<16x20xf32>
    %13 = arith.select %7, %5, %12 : vector<16x20xi1>, vector<16x20xf32>
    %cst_8 = arith.constant 1.05070102 : f32
    %14 = vector.broadcast %cst_8 : f32 to vector<16x20xf32>
    %15 = arith.mulf %14, %13 : vector<16x20xf32>
    %c0_9 = arith.constant 0 : index
    %c0_10 = arith.constant 0 : index
    %16 = vector.load %arg4[%c0_9, %c0_10] : memref<20x14xf32, #tpu.memory_space<vmem>>, vector<20x14xf32>
    %cst_11 = arith.constant dense<0.000000e+00> : vector<16x14xf32>
    %17 = tpu.matmul %15, %16, %cst_11 {dimension_numbers = #tpu.dot_dimension_numbers<[1], [0], [0], [1], [0, 0, 1, 1], [], []>, precision = #tpu.contract_precision<fp32>} : vector<16x20xf32>, vector<20x14xf32>, vector<16x14xf32> -> vector<16x14xf32>
    %c0_12 = arith.constant 0 : index
    %c0_13 = arith.constant 0 : index
    %18 = vector.load %arg5[%c0_12, %c0_13] : memref<1x14xf32, #tpu.memory_space<vmem>>, vector<1x14xf32>
    %19 = vector.broadcast %18 : vector<1x14xf32> to vector<16x14xf32>
    %20 = arith.addf %17, %19 : vector<16x14xf32>
    %cst_14 = arith.constant 0.000000e+00 : f32
    %21 = vector.broadcast %cst_14 : f32 to vector<16x14xf32>
    %22 = arith.cmpf ogt, %20, %21 : vector<16x14xf32>
    %23 = math.exp %20 : vector<16x14xf32>
    %cst_15 = arith.constant 1.000000e+00 : f32
    %24 = vector.broadcast %cst_15 : f32 to vector<16x14xf32>
    %25 = arith.subf %23, %24 : vector<16x14xf32>
    %cst_16 = arith.constant 1.67326319 : f32
    %26 = vector.broadcast %cst_16 : f32 to vector<16x14xf32>
    %27 = arith.mulf %26, %25 : vector<16x14xf32>
    %28 = arith.select %22, %20, %27 : vector<16x14xi1>, vector<16x14xf32>
    %cst_17 = arith.constant 1.05070102 : f32
    %29 = vector.broadcast %cst_17 : f32 to vector<16x14xf32>
    %30 = arith.mulf %29, %28 : vector<16x14xf32>
    %c0_18 = arith.constant 0 : index
    %c0_19 = arith.constant 0 : index
    %31 = vector.load %arg6[%c0_18, %c0_19] : memref<14x11xf32, #tpu.memory_space<vmem>>, vector<14x11xf32>
    %cst_20 = arith.constant dense<0.000000e+00> : vector<16x11xf32>
    %32 = tpu.matmul %30, %31, %cst_20 {dimension_numbers = #tpu.dot_dimension_numbers<[1], [0], [0], [1], [0, 0, 1, 1], [], []>, precision = #tpu.contract_precision<fp32>} : vector<16x14xf32>, vector<14x11xf32>, vector<16x11xf32> -> vector<16x11xf32>
    %c0_21 = arith.constant 0 : index
    %c0_22 = arith.constant 0 : index
    %33 = vector.load %arg7[%c0_21, %c0_22] : memref<1x11xf32, #tpu.memory_space<vmem>>, vector<1x11xf32>
    %34 = vector.broadcast %33 : vector<1x11xf32> to vector<16x11xf32>
    %35 = arith.addf %32, %34 : vector<16x11xf32>
    %36 = tpu.iota {dimensions = array<i32: 1>} : vector<1x11xi32>
    %c10_i32 = arith.constant 10 : i32
    %37 = vector.broadcast %c10_i32 : i32 to vector<1x11xi32>
    %38 = arith.cmpi slt, %36, %37 : vector<1x11xi32>
    %cst_23 = arith.constant 0xFF800000 : f32
    %39 = vector.shape_cast %38 : vector<1x11xi1> to vector<1x11xi1>
    %40 = vector.broadcast %39 : vector<1x11xi1> to vector<16x11xi1>
    %41 = vector.broadcast %cst_23 : f32 to vector<16x11xf32>
    %42 = arith.select %40, %35, %41 : vector<16x11xi1>, vector<16x11xf32>
    %cst_24 = arith.constant dense<0xFF800000> : vector<16xf32>
    %43 = vector.multi_reduction <maximumf>, %42, %cst_24 [1] : vector<16x11xf32> to vector<16xf32>
    %44 = vector.shape_cast %43 : vector<16xf32> to vector<16x1xf32>
    %45 = vector.broadcast %44 : vector<16x1xf32> to vector<16x11xf32>
    %46 = arith.subf %42, %45 : vector<16x11xf32>
    %47 = math.exp %46 : vector<16x11xf32>
    %cst_25 = arith.constant dense<0.000000e+00> : vector<16xf32>
    %48 = vector.multi_reduction <add>, %47, %cst_25 [1] : vector<16x11xf32> to vector<16xf32>
    %49 = vector.shape_cast %48 : vector<16xf32> to vector<16x1xf32>
    %50 = vector.broadcast %49 : vector<16x1xf32> to vector<16x11xf32>
    %51 = arith.divf %47, %50 : vector<16x11xf32>
    %52 = vector.shape_cast %38 : vector<1x11xi1> to vector<1x11xi1>
    %53 = vector.broadcast %52 : vector<1x11xi1> to vector<16x11xi1>
    %54 = arith.select %53, %51, %35 : vector<16x11xi1>, vector<16x11xf32>
    %c0_26 = arith.constant 0 : index
    %c0_27 = arith.constant 0 : index
    %55 = vector.load %arg8[%c0_26, %c0_27] : memref<16x11xf32, #tpu.memory_space<vmem>>, vector<16x11xf32>
    tpu.vector_store %arg8[%c0_26, %c0_27], %54 {strides = array<i32>} : memref<16x11xf32, #tpu.memory_space<vmem>>, vector<16x11xf32>,
    return
  }
  func.func @transform_0(%arg0: i32) -> (i32, i32) {
    %c0_i32 = arith.constant 0 : i32
    %c0_i32_0 = arith.constant 0 : i32
    return %arg0, %c0_i32 : i32, i32
  }
  func.func @transform_1(%arg0: i32) -> (i32, i32) {
    %c0_i32 = arith.constant 0 : i32
    %c0_i32_0 = arith.constant 0 : i32
    %c0_i32_1 = arith.constant 0 : i32
    return %c0_i32, %c0_i32_0 : i32, i32
  }
  func.func @transform_2(%arg0: i32) -> (i32, i32) {
    %c0_i32 = arith.constant 0 : i32
    %c0_i32_0 = arith.constant 0 : i32
    %c0_i32_1 = arith.constant 0 : i32
    return %c0_i32, %c0_i32_0 : i32, i32
  }
  func.func @transform_3(%arg0: i32) -> (i32, i32) {
    %c0_i32 = arith.constant 0 : i32
    %c0_i32_0 = arith.constant 0 : i32
    %c0_i32_1 = arith.constant 0 : i32
    return %c0_i32, %c0_i32_0 : i32, i32
  }
  func.func @transform_4(%arg0: i32) -> (i32, i32) {
    %c0_i32 = arith.constant 0 : i32
    %c0_i32_0 = arith.constant 0 : i32
    %c0_i32_1 = arith.constant 0 : i32
    return %c0_i32, %c0_i32_0 : i32, i32
  }
  func.func @transform_5(%arg0: i32) -> (i32, i32) {
    %c0_i32 = arith.constant 0 : i32
    %c0_i32_0 = arith.constant 0 : i32
    %c0_i32_1 = arith.constant 0 : i32
    return %c0_i32, %c0_i32_0 : i32, i32
  }
  func.func @transform_6(%arg0: i32) -> (i32, i32) {
    %c0_i32 = arith.constant 0 : i32
    %c0_i32_0 = arith.constant 0 : i32
    %c0_i32_1 = arith.constant 0 : i32
    return %c0_i32, %c0_i32_0 : i32, i32
  }
  func.func @transform_7(%arg0: i32) -> (i32, i32) {
    %c0_i32 = arith.constant 0 : i32
    %c0_i32_0 = arith.constant 0 : i32
    return %arg0, %c0_i32 : i32, i32
  }
}

</mosaic_0001>

<llo_original>
// kernel: tpu_custom_call.1
$region0: #{tpu_custom_call.1}
  #allocation0 [shape = 'u32[]', space=smem, size = 0x4, offset = 0x4, fixed_abs, tag = 'smem constant byte address 0x4 - core index']
  #allocation1 [shape = 'u32[144,128]{1,0:T(1,128)}', space=vmem, size = 0x12000, scoped, tag = 'internal scratch']
  %s0 = inlined_call_operand.vmem [shape: f32[32,16], index: 0, kind: input, shape index: {}]
  %s1 = inlined_call_operand.vmem [shape: f32[16,20], index: 1, kind: input, shape index: {}]
  %s2 = inlined_call_operand.vmem [shape: f32[1,20], index: 2, kind: input, shape index: {}]
  %s3 = inlined_call_operand.vmem [shape: f32[20,14], index: 3, kind: input, shape index: {}]
  %s4 = inlined_call_operand.vmem [shape: f32[1,14], index: 4, kind: input, shape index: {}]
  %s5 = inlined_call_operand.vmem [shape: f32[14,11], index: 5, kind: input, shape index: {}]
  %s6 = inlined_call_operand.vmem [shape: f32[1,11], index: 6, kind: input, shape index: {}]
  %s7 = inlined_call_operand.vmem [shape: f32[32,11], index: 7, kind: output, shape index: {}]
  %s8 = sld [smem:[#allocation0]]
  $region61: #{tpu_custom_call.1} parent=0
    _
  %s10 = ssub.s32 1, %s8
  %s11 = scalar_select 0, %s10, %s8
  loop: start=0, step=1, limit=4
  $region2: #{tpu_custom_call.1} parent=0 // loop_pre_header
    _
  $region3: #{tpu_custom_call.1} parent=0 // loop_header
    %s13 = sphi 0, %s17
    %p14 = scmp.ge.s32.totalorder %s13, 4
    %s23 = sphi 0, %s25
    %s26 = sphi 0, %s23
    %s27 = sphi 0, %s26
    %s43 = sphi 0, %s27
    %s47 = sphi 0, %s47
    %s49 = sphi 0, %s47
    %s50 = sphi 0, %s49
    %s64 = sphi 0, %s50
    %s68 = sphi 0, %s68
    %s70 = sphi 0, %s68
    %s71 = sphi 0, %s70
    %s85 = sphi 0, %s71
    %s89 = sphi 0, %s89
    %s91 = sphi 0, %s89
    %s92 = sphi 0, %s91
    %s106 = sphi 0, %s92
    %s110 = sphi 0, %s110
    %s112 = sphi 0, %s110
    %s113 = sphi 0, %s112
    %s127 = sphi 0, %s113
    %s131 = sphi 0, %s131
    %s133 = sphi 0, %s131
    %s134 = sphi 0, %s133
    %s148 = sphi 0, %s134
    %s152 = sphi 0, %s152
    %s154 = sphi 0, %s152
    %s155 = sphi 0, %s154
    %s169 = sphi 0, %s155
    %s175 = sphi 0, %s177
    %s178 = sphi 0, %s175
    %s179 = sphi 0, %s178
    %s195 = sphi 0, %s179
  $region4: #{tpu_custom_call.1} parent=0 // loop_header_branch
    %16 = sbr.rel (%p14) target = $region8
  $region5: #{tpu_custom_call.1} parent=0 // loop_body
    %s18 = ssub.s32 %s13, 1
    %s19 = ssub.s32 %s13, 2
    %s20 = sadd.s32 %s13, 1
    %s21 = ssub.s32 %s13, %s20
    %p22 = scmp.eq.s32.totalorder %s21, 0
    %s24 = sadd.s32 %s23, 1
    %s25 = scalar_select %p22, %s23, %s24
    %p28 = pneg %p22
    %p29 = scmp.eq.s32.totalorder %s13, 1
    %p30 = por %p28, %p29
    %p31 = scmp.ne.s32.totalorder %s23, %s26
    %p32 = scmp.eq.s32.totalorder %s13, 0
    %p33 = por %p31, %p32
    %p34 = scmp.ne.s32.totalorder %s23, %s26
    %p35 = scmp.eq.s32.totalorder %s18, 1
    %p36 = por %p34, %p35
    %p37 = scmp.ne.s32.totalorder %s26, %s27
    %p38 = scmp.eq.s32.totalorder %s18, 0
    %p39 = por %p37, %p38
    %p40 = scmp.ne.s32.totalorder %s26, %s27
    %p41 = scmp.eq.s32.totalorder %s19, 1
    %p42 = por %p40, %p41
    %p44 = scmp.ne.s32.totalorder %s27, %s43
    %p45 = scmp.eq.s32.totalorder %s19, 0
    %p46 = por %p44, %p45
    %s48 = sadd.s32 %s47, 1
    %p51 = scmp.eq.s32.totalorder %s13, 1
    %p52 = scmp.ne.s32.totalorder %s47, %s49
    %p53 = scmp.eq.s32.totalorder %s13, 0
    %p54 = por %p52, %p53
    %p55 = scmp.ne.s32.totalorder %s47, %s49
    %p56 = scmp.eq.s32.totalorder %s18, 1
    %p57 = por %p55, %p56
    %p58 = scmp.ne.s32.totalorder %s49, %s50
    %p59 = scmp.eq.s32.totalorder %s18, 0
    %p60 = por %p58, %p59
    %p61 = scmp.ne.s32.totalorder %s49, %s50
    %p62 = scmp.eq.s32.totalorder %s19, 1
    %p63 = por %p61, %p62
    %p65 = scmp.ne.s32.totalorder %s50, %s64
    %p66 = scmp.eq.s32.totalorder %s19, 0
    %p67 = por %p65, %p66
    %s69 = sadd.s32 %s68, 1
    %p72 = scmp.eq.s32.totalorder %s13, 1
    %p73 = scmp.ne.s32.totalorder %s68, %s70
    %p74 = scmp.eq.s32.totalorder %s13, 0
    %p75 = por %p73, %p74
    %p76 = scmp.ne.s32.totalorder %s68, %s70
    %p77 = scmp.eq.s32.totalorder %s18, 1
    %p78 = por %p76, %p77
    %p79 = scmp.ne.s32.totalorder %s70, %s71
    %p80 = scmp.eq.s32.totalorder %s18, 0
    %p81 = por %p79, %p80
    %p82 = scmp.ne.s32.totalorder %s70, %s71
    %p83 = scmp.eq.s32.totalorder %s19, 1
    %p84 = por %p82, %p83
    %p86 = scmp.ne.s32.totalorder %s71, %s85
    %p87 = scmp.eq.s32.totalorder %s19, 0
    %p88 = por %p86, %p87
    %s90 = sadd.s32 %s89, 1
    %p93 = scmp.eq.s32.totalorder %s13, 1
    %p94 = scmp.ne.s32.totalorder %s89, %s91
    %p95 = scmp.eq.s32.totalorder %s13, 0
    %p96 = por %p94, %p95
    %p97 = scmp.ne.s32.totalorder %s89, %s91
    %p98 = scmp.eq.s32.totalorder %s18, 1
    %p99 = por %p97, %p98
    %p100 = scmp.ne.s32.totalorder %s91, %s92
    %p101 = scmp.eq.s32.totalorder %s18, 0
    %p102 = por %p100, %p101
    %p103 = scmp.ne.s32.totalorder %s91, %s92
    %p104 = scmp.eq.s32.totalorder %s19, 1
    %p105 = por %p103, %p104
    %p107 = scmp.ne.s32.totalorder %s92, %s106
    %p108 = scmp.eq.s32.totalorder %s19, 0
    %p109 = por %p107, %p108
    %s111 = sadd.s32 %s110, 1
    %p114 = scmp.eq.s32.totalorder %s13, 1
    %p115 = scmp.ne.s32.totalorder %s110, %s112
    %p116 = scmp.eq.s32.totalorder %s13, 0
    %p117 = por %p115, %p116
    %p118 = scmp.ne.s32.totalorder %s110, %s112
    %p119 = scmp.eq.s32.totalorder %s18, 1
    %p120 = por %p118, %p119
    %p121 = scmp.ne.s32.totalorder %s112, %s113
    %p122 = scmp.eq.s32.totalorder %s18, 0
    %p123 = por %p121, %p122
    %p124 = scmp.ne.s32.totalorder %s112, %s113
    %p125 = scmp.eq.s32.totalorder %s19, 1
    %p126 = por %p124, %p125
    %p128 = scmp.ne.s32.totalorder %s113, %s127
    %p129 = scmp.eq.s32.totalorder %s19, 0
    %p130 = por %p128, %p129
    %s132 = sadd.s32 %s131, 1
    %p135 = scmp.eq.s32.totalorder %s13, 1
    %p136 = scmp.ne.s32.totalorder %s131, %s133
    %p137 = scmp.eq.s32.totalorder %s13, 0
    %p138 = por %p136, %p137
    %p139 = scmp.ne.s32.totalorder %s131, %s133
    %p140 = scmp.eq.s32.totalorder %s18, 1
    %p141 = por %p139, %p140
    %p142 = scmp.ne.s32.totalorder %s133, %s134
    %p143 = scmp.eq.s32.totalorder %s18, 0
    %p144 = por %p142, %p143
    %p145 = scmp.ne.s32.totalorder %s133, %s134
    %p146 = scmp.eq.s32.totalorder %s19, 1
    %p147 = por %p145, %p146
    %p149 = scmp.ne.s32.totalorder %s134, %s148
    %p150 = scmp.eq.s32.totalorder %s19, 0
    %p151 = por %p149, %p150
    %s153 = sadd.s32 %s152, 1
    %p156 = scmp.eq.s32.totalorder %s13, 1
    %p157 = scmp.ne.s32.totalorder %s152, %s154
    %p158 = scmp.eq.s32.totalorder %s13, 0
    %p159 = por %p157, %p158
    %p160 = scmp.ne.s32.totalorder %s152, %s154
    %p161 = scmp.eq.s32.totalorder %s18, 1
    %p162 = por %p160, %p161
    %p163 = scmp.ne.s32.totalorder %s154, %s155
    %p164 = scmp.eq.s32.totalorder %s18, 0
    %p165 = por %p163, %p164
    %p166 = scmp.ne.s32.totalorder %s154, %s155
    %p167 = scmp.eq.s32.totalorder %s19, 1
    %p168 = por %p166, %p167
    %p170 = scmp.ne.s32.totalorder %s155, %s169
    %p171 = scmp.eq.s32.totalorder %s19, 0
    %p172 = por %p170, %p171
    %s173 = ssub.s32 %s13, %s20
    %p174 = scmp.eq.s32.totalorder %s173, 0
    %s176 = sadd.s32 %s175, 1
    %s177 = scalar_select %p174, %s175, %s176
    %p180 = pneg %p174
    %p181 = scmp.eq.s32.totalorder %s13, 1
    %p182 = por %p180, %p181
    %p183 = scmp.ne.s32.totalorder %s175, %s178
    %p184 = scmp.eq.s32.totalorder %s13, 0
    %p185 = por %p183, %p184
    %p186 = scmp.ne.s32.totalorder %s175, %s178
    %p187 = scmp.eq.s32.totalorder %s18, 1
    %p188 = por %p186, %p187
    %p189 = scmp.ne.s32.totalorder %s178, %s179
    %p190 = scmp.eq.s32.totalorder %s18, 0
    %p191 = por %p189, %p190
    %p192 = scmp.ne.s32.totalorder %s178, %s179
    %p193 = scmp.eq.s32.totalorder %s19, 1
    %p194 = por %p192, %p193
    %p196 = scmp.ne.s32.totalorder %s179, %s195
    %p197 = scmp.eq.s32.totalorder %s19, 0
    %p198 = por %p196, %p197
    %p199 = scmp.le.s32.totalorder 1, %s13
    %p200 = scmp.lt.s32.totalorder %s13, 3
    %p201 = pnand %p199, %p200
    %p202 = pneg %p201
    // Predicated region
    $region9: #{tpu_custom_call.1} parent=5 // pred_check
      _
    $region10: #{tpu_custom_call.1} parent=5 // pred_check_branch
      %204 = sbr.rel (%p201) target = $region12
    $region11: #{tpu_custom_call.1} parent=5 // pred_region
      %s205 = ssub.s32 %s13, 1
      // Predicated region
      $region13: #{tpu_custom_call.1} parent=11 // pred_check
        %p206 = pneg %p60
      $region14: #{tpu_custom_call.1} parent=11 // pred_check_branch
        %208 = sbr.rel (%p206) target = $region16
      $region15: #{tpu_custom_call.1} parent=11 // pred_region
        _
      $region16: #{tpu_custom_call.1} parent=11 // pred_fallthru
        _
      // Predicated region
      $region17: #{tpu_custom_call.1} parent=11 // pred_check
        %p209 = pneg %p81
      $region18: #{tpu_custom_call.1} parent=11 // pred_check_branch
        %211 = sbr.rel (%p209) target = $region20
      $region19: #{tpu_custom_call.1} parent=11 // pred_region
        _
      $region20: #{tpu_custom_call.1} parent=11 // pred_fallthru
        _
      // Predicated region
      $region21: #{tpu_custom_call.1} parent=11 // pred_check
        %p212 = pneg %p102
      $region22: #{tpu_custom_call.1} parent=11 // pred_check_branch
        %214 = sbr.rel (%p212) target = $region24
      $region23: #{tpu_custom_call.1} parent=11 // pred_region
        _
      $region24: #{tpu_custom_call.1} parent=11 // pred_fallthru
        _
      // Predicated region
      $region25: #{tpu_custom_call.1} parent=11 // pred_check
        %p215 = pneg %p123
      $region26: #{tpu_custom_call.1} parent=11 // pred_check_branch
        %217 = sbr.rel (%p215) target = $region28
      $region27: #{tpu_custom_call.1} parent=11 // pred_region
        _
      $region28: #{tpu_custom_call.1} parent=11 // pred_fallthru
        _
      // Predicated region
      $region29: #{tpu_custom_call.1} parent=11 // pred_check
        %p218 = pneg %p144
      $region30: #{tpu_custom_call.1} parent=11 // pred_check_branch
        %220 = sbr.rel (%p218) target = $region32
      $region31: #{tpu_custom_call.1} parent=11 // pred_region
        _
      $region32: #{tpu_custom_call.1} parent=11 // pred_fallthru
        _
      // Predicated region
      $region33: #{tpu_custom_call.1} parent=11 // pred_check
        %p221 = pneg %p165
      $region34: #{tpu_custom_call.1} parent=11 // pred_check_branch
        %223 = sbr.rel (%p221) target = $region36
      $region35: #{tpu_custom_call.1} parent=11 // pred_region
        _
      $region36: #{tpu_custom_call.1} parent=11 // pred_fallthru
        _
    $region12: #{tpu_custom_call.1} parent=5 // pred_fallthru
      _
    %p224 = scmp.lt.s32.totalorder %s13, 2
    // Predicated region
    $region37: #{tpu_custom_call.1} parent=5 // pred_check
      %p225 = pneg %p224
    $region38: #{tpu_custom_call.1} parent=5 // pred_check_branch
      %227 = sbr.rel (%p225) target = $region40
    $region39: #{tpu_custom_call.1} parent=5 // pred_region
      // Predicated region
      $region41: #{tpu_custom_call.1} parent=39 // pred_check
        %p228 = pneg %p33
      $region42: #{tpu_custom_call.1} parent=39 // pred_check_branch
        %230 = sbr.rel (%p228) target = $region44
      $region43: #{tpu_custom_call.1} parent=39 // pred_region
        %s231 = smul.u32 2, %s13
        %p232 = scmp.lt.s32.totalorder %s231, 3
        %s233 = scalar_select %p232, %s231, 3
        %s234 = smul.addr %s233, 8
        %s235 = scalar_lea.vmem %s0, %s234
        %s236 = smul.u32 2, %s13
      $region44: #{tpu_custom_call.1} parent=39 // pred_fallthru
        _
    $region40: #{tpu_custom_call.1} parent=5 // pred_fallthru
      _
    %p237 = scmp.le.s32.totalorder 1, %s13
    %p238 = scmp.lt.s32.totalorder %s13, 3
    %p239 = pnand %p237, %p238
    %p240 = pneg %p239
    // Predicated region
    $region45: #{tpu_custom_call.1} parent=5 // pred_check
      _
    $region46: #{tpu_custom_call.1} parent=5 // pred_check_branch
      %242 = sbr.rel (%p239) target = $region48
    $region47: #{tpu_custom_call.1} parent=5 // pred_region
      %s243 = ssub.s32 %s13, 1
      %s244 = smul.u32 2, %s18
      %p245 = scmp.lt.s32.totalorder %s244, 3
      %s246 = scalar_select %p245, %s244, 3
      %s247 = smul.addr %s246, 8
      %s248 = scalar_lea.vmem %s0, %s247
      %p249 = pneg %p39
      %p250 = pneg %p36
      %p251 = pneg %p60
      %p252 = pneg %p57
      %p253 = pneg %p81
      %p254 = pneg %p78
      %p255 = pneg %p102
      %p256 = pneg %p99
      %p257 = pneg %p123
      %p258 = pneg %p120
      %p259 = pneg %p144
      %p260 = pneg %p141
      %p261 = pneg %p165
      %p262 = pneg %p162
      %p263 = pneg %p191
      %p264 = pneg %p188
      %s265 = smul.u32 2, %s18
      %p266 = scmp.lt.s32.totalorder %s265, 3
      %s267 = scalar_select %p266, %s265, 3
      %s268 = smul.addr %s267, 8
      %s269 = scalar_lea.vmem %s7, %s268
      %s270 = smul.u32 2, %s18
      %p271 = scmp.lt.s32.totalorder %s270, 3
      %s272 = scalar_select %p271, %s270, 3
      %s273 = smul.addr %s272, 8
      %s274 = scalar_lea.vmem %s0, %s273
      %s275 = smul.u32 2, %s18
      %s276 = smul.u32 2, %s18
      %p277 = scmp.lt.s32.totalorder %s276, 3
      %s278 = scalar_select %p277, %s276, 3
      %s279 = smul.addr %s278, 8
      %s280 = scalar_lea.vmem %s7, %s279
      %s281 = smul.u32 2, %s18
      %v282 = vld [vmem:[%s274] sm:$0xff]
      %v283 = vld [vmem:[%s274 + $0x8] sm:$0xff]
      %v284 = vld [vmem:[%s1] sm:$0xff]
      %v285 = vld [vmem:[%s1 + $0x8] sm:$0xff]
      %v286 = vld [vmem:[%s2] sm:$0x1]
      %v288 = vlaneseq
      %v289 = vshrl.u32 %v288, 7
      %v290 = vsub.s32 0, %v289
      %v291 = vrot.slane %v286, %v290
      %vm293 = vcmask 130048
      %v295 = vsel %vm293, %v282, 0
      %v298 = vsel %vm293, %v283, 0
      %300 = vmatprep.subr.mxu0 0.0
      %v301 = vand.u32 %v284, 4294901760
      %302 = vmatpush1.msra.mxu0 %v301
      %303 = vmatprep.subr.mxu0 0.0
      %v304 = vand.u32 %v285, 4294901760
      %305 = vmatpush1.msra.mxu0 %v304
      %306 = vmatprep.subr.mxu0 0.0
      %307 = vmatpush1.msra.mxu0 0.0
      %308 = vmatprep.subr.mxu0 0.0
      %309 = vmatpush1.msra.mxu0 0.0
      %310 = vmatprep.subr.mxu0 0.0
      %311 = vmatpush1.msra.mxu0 0.0
      %312 = vmatprep.subr.mxu0 0.0
      %313 = vmatpush1.msra.mxu0 0.0
      %314 = vmatprep.subr.mxu0 0.0
      %315 = vmatpush1.msra.mxu0 0.0
      %316 = vmatprep.subr.mxu0 0.0
      %317 = vmatpush1.msra.mxu0 0.0
      %318 = vmatprep.subr.mxu0 0.0
      %319 = vmatpush1.msra.mxu0 0.0
      %320 = vmatprep.subr.mxu0 0.0
      %321 = vmatpush1.msra.mxu0 0.0
      %322 = vmatprep.subr.mxu0 0.0
      %323 = vmatpush1.msra.mxu0 0.0
      %324 = vmatprep.subr.mxu0 0.0
      %325 = vmatpush1.msra.mxu0 0.0
      %326 = vmatprep.subr.mxu0 0.0
      %327 = vmatpush1.msra.mxu0 0.0
      %328 = vmatprep.subr.mxu0 0.0
      %329 = vmatpush1.msra.mxu0 0.0
      %330 = vmatprep.subr.mxu0 0.0
      %331 = vmatpush1.msra.mxu0 0.0
      %332 = vmatprep.subr.mxu0 0.0
      %333 = vmatpush1.msra.mxu0 0.0
      %334 = vmatprep.subr.mxu0 0.0
      %335 = vmatpush1.msra.mxu0 0.0
      %336 = vmatprep.subr.mxu0 0.0
      %337 = vmatpush1.msra.mxu0 0.0
      %338 = vmatprep.subr.mxu0 0.0
      %339 = vmatpush1.msra.mxu0 0.0
      %340 = vmatprep.subr.mxu0 0.0
      %341 = vmatpush1.msra.mxu0 0.0
      %342 = vmatprep.subr.mxu0 0.0
      %343 = vmatpush1.msra.mxu0 0.0
      %344 = vmatprep.subr.mxu0 0.0
      %345 = vmatpush1.msra.mxu0 0.0
      %346 = vmatprep.subr.mxu0 0.0
      %347 = vmatpush1.msra.mxu0 0.0
      %348 = vmatprep.subr.mxu0 0.0
      %349 = vmatpush1.msra.mxu0 0.0
      %350 = vmatprep.subr.mxu0 0.0
      %351 = vmatpush1.msra.mxu0 0.0
      %352 = vmatprep.subr.mxu0 0.0
      %353 = vmatpush1.msra.mxu0 0.0
      %354 = vmatprep.subr.mxu0 0.0
      %355 = vmatpush1.msra.mxu0 0.0
      %356 = vmatprep.subr.mxu0 0.0
      %357 = vmatpush1.msra.mxu0 0.0
      %358 = vmatprep.subr.mxu0 0.0
      %359 = vmatpush1.msra.mxu0 0.0
      %360 = vmatprep.subr.mxu0 0.0
      %361 = vmatpush1.msra.mxu0 0.0
      %362 = vmatprep.subr.mxu0 0.0
      %363 = vmatpush1.msra.mxu0 0.0
      %364 = vmatprep.subr.mxu0 0.0
      %365 = vmatpush1.msra.mxu0 0.0
      %366 = vmatprep.mubr.f32.mxu0 0.0
      %v367 = vand.u32 %v295, 4294901760
      %v368 = vsub.f32 %v295, %v367
      %v369 = vand.u32 %v368, 4294901760
      %v370 = vsub.f32 %v368, %v369
      %v371 = vand.u32 %v370, 4294901760
      %372 = vmatmul.mubr.f32.gmra.mrb[0].mxu0 %v371
      %v373 = vpop.f32.mrb[0].mxu0
      %v374 = vadd.f32 %v291, %v373
      %v375 = vpop.f32.mrb[0].mxu0
      %376 = vmatprep.mubr.f32.mxu0 0.0
      %v377 = vand.u32 %v298, 4294901760
      %v378 = vsub.f32 %v298, %v377
      %v379 = vand.u32 %v378, 4294901760
      %v380 = vsub.f32 %v378, %v379
      %v381 = vand.u32 %v380, 4294901760
      %382 = vmatmul.mubr.f32.gmra.mrb[0].mxu0 %v381
      %v383 = vpop.f32.mrb[0].mxu0
      %v384 = vadd.f32 %v291, %v383
      %v385 = vpop.f32.mrb[0].mxu0
      %386 = vdwg.mxu0
      %387 = vmatprep.subr.mxu0 0.0
      %v388 = vand.u32 %v284, 4294901760
      %v389 = vsub.f32 %v284, %v388
      %v390 = vand.u32 %v389, 4294901760
      %v391 = vsub.f32 %v389, %v390
      %v392 = vand.u32 %v391, 4294901760
      %393 = vmatpush1.msra.mxu0 %v392
      %394 = vmatprep.subr.mxu0 0.0
      %v395 = vand.u32 %v285, 4294901760
      %v396 = vsub.f32 %v285, %v395
      %v397 = vand.u32 %v396, 4294901760
      %v398 = vsub.f32 %v396, %v397
      %v399 = vand.u32 %v398, 4294901760
      %400 = vmatpush1.msra.mxu0 %v399
      %401 = vmatprep.subr.mxu0 0.0
      %402 = vmatpush1.msra.mxu0 0.0
      %403 = vmatprep.subr.mxu0 0.0
      %404 = vmatpush1.msra.mxu0 0.0
      %405 = vmatprep.subr.mxu0 0.0
      %406 = vmatpush1.msra.mxu0 0.0
      %407 = vmatprep.subr.mxu0 0.0
      %408 = vmatpush1.msra.mxu0 0.0
      %409 = vmatprep.subr.mxu0 0.0
      %410 = vmatpush1.msra.mxu0 0.0
      %411 = vmatprep.subr.mxu0 0.0
      %412 = vmatpush1.msra.mxu0 0.0
      %413 = vmatprep.subr.mxu0 0.0
      %414 = vmatpush1.msra.mxu0 0.0
      %415 = vmatprep.subr.mxu0 0.0
      %416 = vmatpush1.msra.mxu0 0.0
      %417 = vmatprep.subr.mxu0 0.0
      %418 = vmatpush1.msra.mxu0 0.0
      %419 = vmatprep.subr.mxu0 0.0
      %420 = vmatpush1.msra.mxu0 0.0
      %421 = vmatprep.subr.mxu0 0.0
      %422 = vmatpush1.msra.mxu0 0.0
      %423 = vmatprep.subr.mxu0 0.0
      %424 = vmatpush1.msra.mxu0 0.0
      %425 = vmatprep.subr.mxu0 0.0
      %426 = vmatpush1.msra.mxu0 0.0
      %427 = vmatprep.subr.mxu0 0.0
      %428 = vmatpush1.msra.mxu0 0.0
      %429 = vmatprep.subr.mxu0 0.0
      %430 = vmatpush1.msra.mxu0 0.0
      %431 = vmatprep.subr.mxu0 0.0
      %432 = vmatpush1.msra.mxu0 0.0
      %433 = vmatprep.subr.mxu0 0.0
      %434 = vmatpush1.msra.mxu0 0.0
      %435 = vmatprep.subr.mxu0 0.0
      %436 = vmatpush1.msra.mxu0 0.0
      %437 = vmatprep.subr.mxu0 0.0
      %438 = vmatpush1.msra.mxu0 0.0
      %439 = vmatprep.subr.mxu0 0.0
      %440 = vmatpush1.msra.mxu0 0.0
      %441 = vmatprep.subr.mxu0 0.0
      %442 = vmatpush1.msra.mxu0 0.0
      %443 = vmatprep.subr.mxu0 0.0
      %444 = vmatpush1.msra.mxu0 0.0
      %445 = vmatprep.subr.mxu0 0.0
      %446 = vmatpush1.msra.mxu0 0.0
      %447 = vmatprep.subr.mxu0 0.0
      %448 = vmatpush1.msra.mxu0 0.0
      %449 = vmatprep.subr.mxu0 0.0
      %450 = vmatpush1.msra.mxu0 0.0
      %451 = vmatprep.subr.mxu0 0.0
      %452 = vmatpush1.msra.mxu0 0.0
      %453 = vmatprep.subr.mxu0 0.0
      %454 = vmatpush1.msra.mxu0 0.0
      %455 = vmatprep.subr.mxu0 0.0
      %456 = vmatpush1.msra.mxu0 0.0
      %457 = vmatprep.subr.mxu0 0.0
      %458 = vmatpush1.msra.mxu0 0.0
      %459 = vmatprep.subr.mxu0 0.0
      %460 = vmatpush1.msra.mxu0 0.0
      %461 = vmatprep.mubr.f32.mxu0 0.0
      %v462 = vand.u32 %v295, 4294901760
      %463 = vmatmul.mubr.f32.gmra.mrb[0].mxu0 %v462
      %v464 = vpop.f32.mrb[0].mxu0
      %v465 = vadd.f32 %v374, %v464
      %v466 = vpop.f32.mrb[0].mxu0
      %467 = vmatprep.mubr.f32.mxu0 0.0
      %v468 = vand.u32 %v298, 4294901760
      %469 = vmatmul.mubr.f32.gmra.mrb[0].mxu0 %v468
      %v470 = vpop.f32.mrb[0].mxu0
      %v471 = vadd.f32 %v384, %v470
      %v472 = vpop.f32.mrb[0].mxu0
      %473 = vdwg.mxu0
      %474 = vmatprep.subr.mxu0 0.0
      %v475 = vand.u32 %v284, 4294901760
      %v476 = vsub.f32 %v284, %v475
      %477 = vmatpush1.msra.mxu0 %v476
      %478 = vmatprep.subr.mxu0 0.0
      %v479 = vand.u32 %v285, 4294901760
      %v480 = vsub.f32 %v285, %v479
      %481 = vmatpush1.msra.mxu0 %v480
      %482 = vmatprep.subr.mxu0 0.0
      %483 = vmatpush1.msra.mxu0 0.0
      %484 = vmatprep.subr.mxu0 0.0
      %485 = vmatpush1.msra.mxu0 0.0
      %486 = vmatprep.subr.mxu0 0.0
      %487 = vmatpush1.msra.mxu0 0.0
      %488 = vmatprep.subr.mxu0 0.0
      %489 = vmatpush1.msra.mxu0 0.0
      %490 = vmatprep.subr.mxu0 0.0
      %491 = vmatpush1.msra.mxu0 0.0
      %492 = vmatprep.subr.mxu0 0.0
      %493 = vmatpush1.msra.mxu0 0.0
      %494 = vmatprep.subr.mxu0 0.0
      %495 = vmatpush1.msra.mxu0 0.0
      %496 = vmatprep.subr.mxu0 0.0
      %497 = vmatpush1.msra.mxu0 0.0
      %498 = vmatprep.subr.mxu0 0.0
      %499 = vmatpush1.msra.mxu0 0.0
      %500 = vmatprep.subr.mxu0 0.0
      %501 = vmatpush1.msra.mxu0 0.0
      %502 = vmatprep.subr.mxu0 0.0
      %503 = vmatpush1.msra.mxu0 0.0
      %504 = vmatprep.subr.mxu0 0.0
      %505 = vmatpush1.msra.mxu0 0.0
      %506 = vmatprep.subr.mxu0 0.0
      %507 = vmatpush1.msra.mxu0 0.0
      %508 = vmatprep.subr.mxu0 0.0
      %509 = vmatpush1.msra.mxu0 0.0
      %510 = vmatprep.subr.mxu0 0.0
      %511 = vmatpush1.msra.mxu0 0.0
      %512 = vmatprep.subr.mxu0 0.0
      %513 = vmatpush1.msra.mxu0 0.0
      %514 = vmatprep.subr.mxu0 0.0
      %515 = vmatpush1.msra.mxu0 0.0
      %516 = vmatprep.subr.mxu0 0.0
      %517 = vmatpush1.msra.mxu0 0.0
      %518 = vmatprep.subr.mxu0 0.0
      %519 = vmatpush1.msra.mxu0 0.0
      %520 = vmatprep.subr.mxu0 0.0
      %521 = vmatpush1.msra.mxu0 0.0
      %522 = vmatprep.subr.mxu0 0.0
      %523 = vmatpush1.msra.mxu0 0.0
      %524 = vmatprep.subr.mxu0 0.0
      %525 = vmatpush1.msra.mxu0 0.0
      %526 = vmatprep.subr.mxu0 0.0
      %527 = vmatpush1.msra.mxu0 0.0
      %528 = vmatprep.subr.mxu0 0.0
      %529 = vmatpush1.msra.mxu0 0.0
      %530 = vmatprep.subr.mxu0 0.0
      %531 = vmatpush1.msra.mxu0 0.0
      %532 = vmatprep.subr.mxu0 0.0
      %533 = vmatpush1.msra.mxu0 0.0
      %534 = vmatprep.subr.mxu0 0.0
      %535 = vmatpush1.msra.mxu0 0.0
      %536 = vmatprep.subr.mxu0 0.0
      %537 = vmatpush1.msra.mxu0 0.0
      %538 = vmatprep.subr.mxu0 0.0
      %539 = vmatpush1.msra.mxu0 0.0
      %540 = vmatprep.subr.mxu0 0.0
      %541 = vmatpush1.msra.mxu0 0.0
      %542 = vmatprep.mubr.f32.mxu0 0.0
      %v543 = vand.u32 %v295, 4294901760
      %v544 = vsub.f32 %v295, %v543
      %545 = vmatmul.mubr.f32.gmra.mrb[0].mxu0 %v544
      %v546 = vpop.f32.mrb[0].mxu0
      %v547 = vadd.f32 %v465, %v546
      %v548 = vpop.f32.mrb[0].mxu0
      %549 = vmatprep.mubr.f32.mxu0 0.0
      %v550 = vand.u32 %v298, 4294901760
      %v551 = vsub.f32 %v298, %v550
      %552 = vmatmul.mubr.f32.gmra.mrb[0].mxu0 %v551
      %v553 = vpop.f32.mrb[0].mxu0
      %v554 = vadd.f32 %v471, %v553
      %v555 = vpop.f32.mrb[0].mxu0
      %556 = vdwg.mxu0
      %557 = vmatprep.subr.mxu0 0.0
      %v558 = vand.u32 %v284, 4294901760
      %559 = vmatpush1.msra.mxu0 %v558
      %560 = vmatprep.subr.mxu0 0.0
      %v561 = vand.u32 %v285, 4294901760
      %562 = vmatpush1.msra.mxu0 %v561
      %563 = vmatprep.subr.mxu0 0.0
      %564 = vmatpush1.msra.mxu0 0.0
      %565 = vmatprep.subr.mxu0 0.0
      %566 = vmatpush1.msra.mxu0 0.0
      %567 = vmatprep.subr.mxu0 0.0
      %568 = vmatpush1.msra.mxu0 0.0
      %569 = vmatprep.subr.mxu0 0.0
      %570 = vmatpush1.msra.mxu0 0.0
      %571 = vmatprep.subr.mxu0 0.0
      %572 = vmatpush1.msra.mxu0 0.0
      %573 = vmatprep.subr.mxu0 0.0
      %574 = vmatpush1.msra.mxu0 0.0
      %575 = vmatprep.subr.mxu0 0.0
      %576 = vmatpush1.msra.mxu0 0.0
      %577 = vmatprep.subr.mxu0 0.0
      %578 = vmatpush1.msra.mxu0 0.0
      %579 = vmatprep.subr.mxu0 0.0
      %580 = vmatpush1.msra.mxu0 0.0
      %581 = vmatprep.subr.mxu0 0.0
      %582 = vmatpush1.msra.mxu0 0.0
      %583 = vmatprep.subr.mxu0 0.0
      %584 = vmatpush1.msra.mxu0 0.0
      %585 = vmatprep.subr.mxu0 0.0
      %586 = vmatpush1.msra.mxu0 0.0
      %587 = vmatprep.subr.mxu0 0.0
      %588 = vmatpush1.msra.mxu0 0.0
      %589 = vmatprep.subr.mxu0 0.0
      %590 = vmatpush1.msra.mxu0 0.0
      %591 = vmatprep.subr.mxu0 0.0
      %592 = vmatpush1.msra.mxu0 0.0
      %593 = vmatprep.subr.mxu0 0.0
      %594 = vmatpush1.msra.mxu0 0.0
      %595 = vmatprep.subr.mxu0 0.0
      %596 = vmatpush1.msra.mxu0 0.0
      %597 = vmatprep.subr.mxu0 0.0
      %598 = vmatpush1.msra.mxu0 0.0
      %599 = vmatprep.subr.mxu0 0.0
      %600 = vmatpush1.msra.mxu0 0.0
      %601 = vmatprep.subr.mxu0 0.0
      %602 = vmatpush1.msra.mxu0 0.0
      %603 = vmatprep.subr.mxu0 0.0
      %604 = vmatpush1.msra.mxu0 0.0
      %605 = vmatprep.subr.mxu0 0.0
      %606 = vmatpush1.msra.mxu0 0.0
      %607 = vmatprep.subr.mxu0 0.0
      %608 = vmatpush1.msra.mxu0 0.0
      %609 = vmatprep.subr.mxu0 0.0
      %610 = vmatpush1.msra.mxu0 0.0
      %611 = vmatprep.subr.mxu0 0.0
      %612 = vmatpush1.msra.mxu0 0.0
      %613 = vmatprep.subr.mxu0 0.0
      %614 = vmatpush1.msra.mxu0 0.0
      %615 = vmatprep.subr.mxu0 0.0
      %616 = vmatpush1.msra.mxu0 0.0
      %617 = vmatprep.subr.mxu0 0.0
      %618 = vmatpush1.msra.mxu0 0.0
      %619 = vmatprep.subr.mxu0 0.0
      %620 = vmatpush1.msra.mxu0 0.0
      %621 = vmatprep.subr.mxu0 0.0
      %622 = vmatpush1.msra.mxu0 0.0
      %623 = vmatprep.mubr.f32.mxu0 0.0
      %v624 = vand.u32 %v295, 4294901760
      %v625 = vsub.f32 %v295, %v624
      %v626 = vand.u32 %v625, 4294901760
      %627 = vmatmul.mubr.f32.gmra.mrb[0].mxu0 %v626
      %v628 = vpop.f32.mrb[0].mxu0
      %v629 = vadd.f32 %v547, %v628
      %v630 = vpop.f32.mrb[0].mxu0
      %631 = vmatprep.mubr.f32.mxu0 0.0
      %v632 = vand.u32 %v298, 4294901760
      %v633 = vsub.f32 %v298, %v632
      %v634 = vand.u32 %v633, 4294901760
      %635 = vmatmul.mubr.f32.gmra.mrb[0].mxu0 %v634
      %v636 = vpop.f32.mrb[0].mxu0
      %v637 = vadd.f32 %v554, %v636
      %v638 = vpop.f32.mrb[0].mxu0
      %639 = vdwg.mxu0
      %640 = vmatprep.subr.mxu0 0.0
      %v641 = vand.u32 %v284, 4294901760
      %v642 = vsub.f32 %v284, %v641
      %v643 = vand.u32 %v642, 4294901760
      %644 = vmatpush1.msra.mxu0 %v643
      %645 = vmatprep.subr.mxu0 0.0
      %v646 = vand.u32 %v285, 4294901760
      %v647 = vsub.f32 %v285, %v646
      %v648 = vand.u32 %v647, 4294901760
      %649 = vmatpush1.msra.mxu0 %v648
      %650 = vmatprep.subr.mxu0 0.0
      %651 = vmatpush1.msra.mxu0 0.0
      %652 = vmatprep.subr.mxu0 0.0
      %653 = vmatpush1.msra.mxu0 0.0
      %654 = vmatprep.subr.mxu0 0.0
      %655 = vmatpush1.msra.mxu0 0.0
      %656 = vmatprep.subr.mxu0 0.0
      %657 = vmatpush1.msra.mxu0 0.0
      %658 = vmatprep.subr.mxu0 0.0
      %659 = vmatpush1.msra.mxu0 0.0
      %660 = vmatprep.subr.mxu0 0.0
      %661 = vmatpush1.msra.mxu0 0.0
      %662 = vmatprep.subr.mxu0 0.0
      %663 = vmatpush1.msra.mxu0 0.0
      %664 = vmatprep.subr.mxu0 0.0
      %665 = vmatpush1.msra.mxu0 0.0
      %666 = vmatprep.subr.mxu0 0.0
      %667 = vmatpush1.msra.mxu0 0.0
      %668 = vmatprep.subr.mxu0 0.0
      %669 = vmatpush1.msra.mxu0 0.0
      %670 = vmatprep.subr.mxu0 0.0
      %671 = vmatpush1.msra.mxu0 0.0
      %672 = vmatprep.subr.mxu0 0.0
      %673 = vmatpush1.msra.mxu0 0.0
      %674 = vmatprep.subr.mxu0 0.0
      %675 = vmatpush1.msra.mxu0 0.0
      %676 = vmatprep.subr.mxu0 0.0
      %677 = vmatpush1.msra.mxu0 0.0
      %678 = vmatprep.subr.mxu0 0.0
      %679 = vmatpush1.msra.mxu0 0.0
      %680 = vmatprep.subr.mxu0 0.0
      %681 = vmatpush1.msra.mxu0 0.0
      %682 = vmatprep.subr.mxu0 0.0
      %683 = vmatpush1.msra.mxu0 0.0
      %684 = vmatprep.subr.mxu0 0.0
      %685 = vmatpush1.msra.mxu0 0.0
      %686 = vmatprep.subr.mxu0 0.0
      %687 = vmatpush1.msra.mxu0 0.0
      %688 = vmatprep.subr.mxu0 0.0
      %689 = vmatpush1.msra.mxu0 0.0
      %690 = vmatprep.subr.mxu0 0.0
      %691 = vmatpush1.msra.mxu0 0.0
      %692 = vmatprep.subr.mxu0 0.0
      %693 = vmatpush1.msra.mxu0 0.0
      %694 = vmatprep.subr.mxu0 0.0
      %695 = vmatpush1.msra.mxu0 0.0
      %696 = vmatprep.subr.mxu0 0.0
      %697 = vmatpush1.msra.mxu0 0.0
      %698 = vmatprep.subr.mxu0 0.0
      %699 = vmatpush1.msra.mxu0 0.0
      %700 = vmatprep.subr.mxu0 0.0
      %701 = vmatpush1.msra.mxu0 0.0
      %702 = vmatprep.subr.mxu0 0.0
      %703 = vmatpush1.msra.mxu0 0.0
      %704 = vmatprep.subr.mxu0 0.0
      %705 = vmatpush1.msra.mxu0 0.0
      %706 = vmatprep.subr.mxu0 0.0
      %707 = vmatpush1.msra.mxu0 0.0
      %708 = vmatprep.subr.mxu0 0.0
      %709 = vmatpush1.msra.mxu0 0.0
      %710 = vmatprep.mubr.f32.mxu0 0.0
      %v711 = vand.u32 %v295, 4294901760
      %712 = vmatmul.mubr.f32.gmra.mrb[0].mxu0 %v711
      %v713 = vpop.f32.mrb[0].mxu0
      %v714 = vadd.f32 %v629, %v713
      %v715 = vpop.f32.mrb[0].mxu0
      %716 = vmatprep.mubr.f32.mxu0 0.0
      %v717 = vand.u32 %v298, 4294901760
      %718 = vmatmul.mubr.f32.gmra.mrb[0].mxu0 %v717
      %v719 = vpop.f32.mrb[0].mxu0
      %v720 = vadd.f32 %v637, %v719
      %v721 = vpop.f32.mrb[0].mxu0
      %722 = vdwg.mxu0
      %723 = vmatprep.subr.mxu0 0.0
      %v724 = vand.u32 %v284, 4294901760
      %725 = vmatpush1.msra.mxu0 %v724
      %726 = vmatprep.subr.mxu0 0.0
      %v727 = vand.u32 %v285, 4294901760
      %728 = vmatpush1.msra.mxu0 %v727
      %729 = vmatprep.subr.mxu0 0.0
      %730 = vmatpush1.msra.mxu0 0.0
      %731 = vmatprep.subr.mxu0 0.0
      %732 = vmatpush1.msra.mxu0 0.0
      %733 = vmatprep.subr.mxu0 0.0
      %734 = vmatpush1.msra.mxu0 0.0
      %735 = vmatprep.subr.mxu0 0.0
      %736 = vmatpush1.msra.mxu0 0.0
      %737 = vmatprep.subr.mxu0 0.0
      %738 = vmatpush1.msra.mxu0 0.0
      %739 = vmatprep.subr.mxu0 0.0
      %740 = vmatpush1.msra.mxu0 0.0
      %741 = vmatprep.subr.mxu0 0.0
      %742 = vmatpush1.msra.mxu0 0.0
      %743 = vmatprep.subr.mxu0 0.0
      %744 = vmatpush1.msra.mxu0 0.0
      %745 = vmatprep.subr.mxu0 0.0
      %746 = vmatpush1.msra.mxu0 0.0
      %747 = vmatprep.subr.mxu0 0.0
      %748 = vmatpush1.msra.mxu0 0.0
      %749 = vmatprep.subr.mxu0 0.0
      %750 = vmatpush1.msra.mxu0 0.0
      %751 = vmatprep.subr.mxu0 0.0
      %752 = vmatpush1.msra.mxu0 0.0
      %753 = vmatprep.subr.mxu0 0.0
      %754 = vmatpush1.msra.mxu0 0.0
      %755 = vmatprep.subr.mxu0 0.0
      %756 = vmatpush1.msra.mxu0 0.0
      %757 = vmatprep.subr.mxu0 0.0
      %758 = vmatpush1.msra.mxu0 0.0
      %759 = vmatprep.subr.mxu0 0.0
      %760 = vmatpush1.msra.mxu0 0.0
      %761 = vmatprep.subr.mxu0 0.0
      %762 = vmatpush1.msra.mxu0 0.0
      %763 = vmatprep.subr.mxu0 0.0
      %764 = vmatpush1.msra.mxu0 0.0
      %765 = vmatprep.subr.mxu0 0.0
      %766 = vmatpush1.msra.mxu0 0.0
      %767 = vmatprep.subr.mxu0 0.0
      %768 = vmatpush1.msra.mxu0 0.0
      %769 = vmatprep.subr.mxu0 0.0
      %770 = vmatpush1.msra.mxu0 0.0
      %771 = vmatprep.subr.mxu0 0.0
      %772 = vmatpush1.msra.mxu0 0.0
      %773 = vmatprep.subr.mxu0 0.0
      %774 = vmatpush1.msra.mxu0 0.0
      %775 = vmatprep.subr.mxu0 0.0
      %776 = vmatpush1.msra.mxu0 0.0
      %777 = vmatprep.subr.mxu0 0.0
      %778 = vmatpush1.msra.mxu0 0.0
      %779 = vmatprep.subr.mxu0 0.0
      %780 = vmatpush1.msra.mxu0 0.0
      %781 = vmatprep.subr.mxu0 0.0
      %782 = vmatpush1.msra.mxu0 0.0
      %783 = vmatprep.subr.mxu0 0.0
      %784 = vmatpush1.msra.mxu0 0.0
      %785 = vmatprep.subr.mxu0 0.0
      %786 = vmatpush1.msra.mxu0 0.0
      %787 = vmatprep.subr.mxu0 0.0
      %788 = vmatpush1.msra.mxu0 0.0
      %789 = vmatprep.mubr.f32.mxu0 0.0
      %v790 = vand.u32 %v295, 4294901760
      %791 = vmatmul.mubr.f32.gmra.mrb[0].mxu0 %v790
      %v792 = vpop.f32.mrb[0].mxu0
      %v793 = vadd.f32 %v714, %v792
      %v794 = vpop.f32.mrb[0].mxu0
      %795 = vmatprep.mubr.f32.mxu0 0.0
      %v796 = vand.u32 %v298, 4294901760
      %797 = vmatmul.mubr.f32.gmra.mrb[0].mxu0 %v796
      %v798 = vpop.f32.mrb[0].mxu0
      %v799 = vadd.f32 %v720, %v798
      %v800 = vpop.f32.mrb[0].mxu0
      %801 = vdwg.mxu0
      %vm802 = vcmp.gt.f32.partialorder %v793, 0.0
      %vm803 = vcmp.gt.f32.partialorder %v799, 0.0
      %v804 = vmul.f32 %v793, 1.442695
      %v805 = vpow.pop %v804
      %v806 = vmul.f32 %v799, 1.442695
      %v807 = vpow.pop %v806
      %v808 = vsub.f32 %v805, 1.0
      %v809 = vsub.f32 %v807, 1.0
      %v810 = vmul.f32 %v808, 1.6732632
      %v811 = vmul.f32 %v809, 1.6732632
      %v812 = vsel %vm802, %v793, %v810
      %v813 = vsel %vm803, %v799, %v811
      %v814 = vmul.f32 %v812, 1.050701
      %v815 = vmul.f32 %v813, 1.050701
      %v816 = vld [vmem:[%s3] sm:$0xff]
      %v817 = vld [vmem:[%s3 + $0x8] sm:$0xff]
      %v818 = vld [vmem:[%s3 + $0x10] sm:$0xf]
      %v819 = vld [vmem:[%s4] sm:$0x1]
      %v821 = vlaneseq
      %v822 = vshrl.u32 %v821, 7
      %v823 = vsub.s32 0, %v822
      %v824 = vrot.slane %v819, %v823
      %vm826 = vcmask 162816
      %v828 = vsel %vm826, %v814, 0
      %v831 = vsel %vm826, %v815, 0
      %vm833 = vcmask 1043456
      %v835 = vsel %vm833, %v818, 0
      %837 = vmatprep.subr.mxu0 0.0
      %v838 = vand.u32 %v816, 4294901760
      %839 = vmatpush1.msra.mxu0 %v838
      %840 = vmatprep.subr.mxu0 0.0
      %v841 = vand.u32 %v817, 4294901760
      %842 = vmatpush1.msra.mxu0 %v841
      %843 = vmatprep.subr.mxu0 0.0
      %v844 = vand.u32 %v835, 4294901760
      %845 = vmatpush1.msra.mxu0 %v844
      %846 = vmatprep.subr.mxu0 0.0
      %847 = vmatpush1.msra.mxu0 0.0
      %848 = vmatprep.subr.mxu0 0.0
      %849 = vmatpush1.msra.mxu0 0.0
      %850 = vmatprep.subr.mxu0 0.0
      %851 = vmatpush1.msra.mxu0 0.0
      %852 = vmatprep.subr.mxu0 0.0
      %853 = vmatpush1.msra.mxu0 0.0
      %854 = vmatprep.subr.mxu0 0.0
      %855 = vmatpush1.msra.mxu0 0.0
      %856 = vmatprep.subr.mxu0 0.0
      %857 = vmatpush1.msra.mxu0 0.0
      %858 = vmatprep.subr.mxu0 0.0
      %859 = vmatpush1.msra.mxu0 0.0
      %860 = vmatprep.subr.mxu0 0.0
      %861 = vmatpush1.msra.mxu0 0.0
      %862 = vmatprep.subr.mxu0 0.0
      %863 = vmatpush1.msra.mxu0 0.0
      %864 = vmatprep.subr.mxu0 0.0
      %865 = vmatpush1.msra.mxu0 0.0
      %866 = vmatprep.subr.mxu0 0.0
      %867 = vmatpush1.msra.mxu0 0.0
      %868 = vmatprep.subr.mxu0 0.0
      %869 = vmatpush1.msra.mxu0 0.0
      %870 = vmatprep.subr.mxu0 0.0
      %871 = vmatpush1.msra.mxu0 0.0
      %872 = vmatprep.subr.mxu0 0.0
      %873 = vmatpush1.msra.mxu0 0.0
      %874 = vmatprep.subr.mxu0 0.0
      %875 = vmatpush1.msra.mxu0 0.0
      %876 = vmatprep.subr.mxu0 0.0
      %877 = vmatpush1.msra.mxu0 0.0
      %878 = vmatprep.subr.mxu0 0.0
      %879 = vmatpush1.msra.mxu0 0.0
      %880 = vmatprep.subr.mxu0 0.0
      %881 = vmatpush1.msra.mxu0 0.0
      %882 = vmatprep.subr.mxu0 0.0
      %883 = vmatpush1.msra.mxu0 0.0
      %884 = vmatprep.subr.mxu0 0.0
      %885 = vmatpush1.msra.mxu0 0.0
      %886 = vmatprep.subr.mxu0 0.0
      %887 = vmatpush1.msra.mxu0 0.0
      %888 = vmatprep.subr.mxu0 0.0
      %889 = vmatpush1.msra.mxu0 0.0
      %890 = vmatprep.subr.mxu0 0.0
      %891 = vmatpush1.msra.mxu0 0.0
      %892 = vmatprep.subr.mxu0 0.0
      %893 = vmatpush1.msra.mxu0 0.0
      %894 = vmatprep.subr.mxu0 0.0
      %895 = vmatpush1.msra.mxu0 0.0
      %896 = vmatprep.subr.mxu0 0.0
      %897 = vmatpush1.msra.mxu0 0.0
      %898 = vmatprep.subr.mxu0 0.0
      %899 = vmatpush1.msra.mxu0 0.0
      %900 = vmatprep.subr.mxu0 0.0
      %901 = vmatpush1.msra.mxu0 0.0
      %902 = vmatprep.subr.mxu0 0.0
      %903 = vmatpush1.msra.mxu0 0.0
      %904 = vmatprep.mubr.f32.mxu0 0.0
      %v905 = vand.u32 %v828, 4294901760
      %v906 = vsub.f32 %v828, %v905
      %v907 = vand.u32 %v906, 4294901760
      %v908 = vsub.f32 %v906, %v907
      %v909 = vand.u32 %v908, 4294901760
      %910 = vmatmul.mubr.f32.gmra.mrb[0].mxu0 %v909
      %v911 = vpop.f32.mrb[0].mxu0
      %v912 = vadd.f32 %v824, %v911
      %v913 = vpop.f32.mrb[0].mxu0
      %914 = vmatprep.mubr.f32.mxu0 0.0
      %v915 = vand.u32 %v831, 4294901760
      %v916 = vsub.f32 %v831, %v915
      %v917 = vand.u32 %v916, 4294901760
      %v918 = vsub.f32 %v916, %v917
      %v919 = vand.u32 %v918, 4294901760
      %920 = vmatmul.mubr.f32.gmra.mrb[0].mxu0 %v919
      %v921 = vpop.f32.mrb[0].mxu0
      %v922 = vadd.f32 %v824, %v921
      %v923 = vpop.f32.mrb[0].mxu0
      %924 = vdwg.mxu0
      %925 = vmatprep.subr.mxu0 0.0
      %v926 = vand.u32 %v816, 4294901760
      %v927 = vsub.f32 %v816, %v926
      %v928 = vand.u32 %v927, 4294901760
      %v929 = vsub.f32 %v927, %v928
      %v930 = vand.u32 %v929, 4294901760
      %931 = vmatpush1.msra.mxu0 %v930
      %932 = vmatprep.subr.mxu0 0.0
      %v933 = vand.u32 %v817, 4294901760
      %v934 = vsub.f32 %v817, %v933
      %v935 = vand.u32 %v934, 4294901760
      %v936 = vsub.f32 %v934, %v935
      %v937 = vand.u32 %v936, 4294901760
      %938 = vmatpush1.msra.mxu0 %v937
      %939 = vmatprep.subr.mxu0 0.0
      %v940 = vand.u32 %v835, 4294901760
      %v941 = vsub.f32 %v835, %v940
      %v942 = vand.u32 %v941, 4294901760
      %v943 = vsub.f32 %v941, %v942
      %v944 = vand.u32 %v943, 4294901760
      %945 = vmatpush1.msra.mxu0 %v944
      %946 = vmatprep.subr.mxu0 0.0
      %947 = vmatpush1.msra.mxu0 0.0
      %948 = vmatprep.subr.mxu0 0.0
      %949 = vmatpush1.msra.mxu0 0.0
      %950 = vmatprep.subr.mxu0 0.0
      %951 = vmatpush1.msra.mxu0 0.0
      %952 = vmatprep.subr.mxu0 0.0
      %953 = vmatpush1.msra.mxu0 0.0
      %954 = vmatprep.subr.mxu0 0.0
      %955 = vmatpush1.msra.mxu0 0.0
      %956 = vmatprep.subr.mxu0 0.0
      %957 = vmatpush1.msra.mxu0 0.0
      %958 = vmatprep.subr.mxu0 0.0
      %959 = vmatpush1.msra.mxu0 0.0
      %960 = vmatprep.subr.mxu0 0.0
      %961 = vmatpush1.msra.mxu0 0.0
      %962 = vmatprep.subr.mxu0 0.0
      %963 = vmatpush1.msra.mxu0 0.0
      %964 = vmatprep.subr.mxu0 0.0
      %965 = vmatpush1.msra.mxu0 0.0
      %966 = vmatprep.subr.mxu0 0.0
      %967 = vmatpush1.msra.mxu0 0.0
      %968 = vmatprep.subr.mxu0 0.0
      %969 = vmatpush1.msra.mxu0 0.0
      %970 = vmatprep.subr.mxu0 0.0
      %971 = vmatpush1.msra.mxu0 0.0
      %972 = vmatprep.subr.mxu0 0.0
      %973 = vmatpush1.msra.mxu0 0.0
      %974 = vmatprep.subr.mxu0 0.0
      %975 = vmatpush1.msra.mxu0 0.0
      %976 = vmatprep.subr.mxu0 0.0
      %977 = vmatpush1.msra.mxu0 0.0
      %978 = vmatprep.subr.mxu0 0.0
      %979 = vmatpush1.msra.mxu0 0.0
      %980 = vmatprep.subr.mxu0 0.0
      %981 = vmatpush1.msra.mxu0 0.0
      %982 = vmatprep.subr.mxu0 0.0
      %983 = vmatpush1.msra.mxu0 0.0
      %984 = vmatprep.subr.mxu0 0.0
      %985 = vmatpush1.msra.mxu0 0.0
      %986 = vmatprep.subr.mxu0 0.0
      %987 = vmatpush1.msra.mxu0 0.0
      %988 = vmatprep.subr.mxu0 0.0
      %989 = vmatpush1.msra.mxu0 0.0
      %990 = vmatprep.subr.mxu0 0.0
      %991 = vmatpush1.msra.mxu0 0.0
      %992 = vmatprep.subr.mxu0 0.0
      %993 = vmatpush1.msra.mxu0 0.0
      %994 = vmatprep.subr.mxu0 0.0
      %995 = vmatpush1.msra.mxu0 0.0
      %996 = vmatprep.subr.mxu0 0.0
      %997 = vmatpush1.msra.mxu0 0.0
      %998 = vmatprep.subr.mxu0 0.0
      %999 = vmatpush1.msra.mxu0 0.0
      %1000 = vmatprep.subr.mxu0 0.0
      %1001 = vmatpush1.msra.mxu0 0.0
      %1002 = vmatprep.subr.mxu0 0.0
      %1003 = vmatpush1.msra.mxu0 0.0
      %1004 = vmatprep.mubr.f32.mxu0 0.0
      %v1005 = vand.u32 %v828, 4294901760
      %1006 = vmatmul.mubr.f32.gmra.mrb[0].mxu0 %v1005
      %v1007 = vpop.f32.mrb[0].mxu0
      %v1008 = vadd.f32 %v912, %v1007
      %v1009 = vpop.f32.mrb[0].mxu0
      %1010 = vmatprep.mubr.f32.mxu0 0.0
      %v1011 = vand.u32 %v831, 4294901760
      %1012 = vmatmul.mubr.f32.gmra.mrb[0].mxu0 %v1011
      %v1013 = vpop.f32.mrb[0].mxu0
      %v1014 = vadd.f32 %v922, %v1013
      %v1015 = vpop.f32.mrb[0].mxu0
      %1016 = vdwg.mxu0
      %1017 = vmatprep.subr.mxu0 0.0
      %v1018 = vand.u32 %v816, 4294901760
      %v1019 = vsub.f32 %v816, %v1018
      %1020 = vmatpush1.msra.mxu0 %v1019
      %1021 = vmatprep.subr.mxu0 0.0
      %v1022 = vand.u32 %v817, 4294901760
      %v1023 = vsub.f32 %v817, %v1022
      %1024 = vmatpush1.msra.mxu0 %v1023
      %1025 = vmatprep.subr.mxu0 0.0
      %v1026 = vand.u32 %v835, 4294901760
      %v1027 = vsub.f32 %v835, %v1026
      %1028 = vmatpush1.msra.mxu0 %v1027
      %1029 = vmatprep.subr.mxu0 0.0
      %1030 = vmatpush1.msra.mxu0 0.0
      %1031 = vmatprep.subr.mxu0 0.0
      %1032 = vmatpush1.msra.mxu0 0.0
      %1033 = vmatprep.subr.mxu0 0.0
      %1034 = vmatpush1.msra.mxu0 0.0
      %1035 = vmatprep.subr.mxu0 0.0
      %1036 = vmatpush1.msra.mxu0 0.0
      %1037 = vmatprep.subr.mxu0 0.0
      %1038 = vmatpush1.msra.mxu0 0.0
      %1039 = vmatprep.subr.mxu0 0.0
      %1040 = vmatpush1.msra.mxu0 0.0
      %1041 = vmatprep.subr.mxu0 0.0
      %1042 = vmatpush1.msra.mxu0 0.0
      %1043 = vmatprep.subr.mxu0 0.0
      %1044 = vmatpush1.msra.mxu0 0.0
      %1045 = vmatprep.subr.mxu0 0.0
      %1046 = vmatpush1.msra.mxu0 0.0
      %1047 = vmatprep.subr.mxu0 0.0
      %1048 = vmatpush1.msra.mxu0 0.0
      %1049 = vmatprep.subr.mxu0 0.0
      %1050 = vmatpush1.msra.mxu0 0.0
      %1051 = vmatprep.subr.mxu0 0.0
      %1052 = vmatpush1.msra.mxu0 0.0
      %1053 = vmatprep.subr.mxu0 0.0
      %1054 = vmatpush1.msra.mxu0 0.0
      %1055 = vmatprep.subr.mxu0 0.0
      %1056 = vmatpush1.msra.mxu0 0.0
      %1057 = vmatprep.subr.mxu0 0.0
      %1058 = vmatpush1.msra.mxu0 0.0
      %1059 = vmatprep.subr.mxu0 0.0
      %1060 = vmatpush1.msra.mxu0 0.0
      %1061 = vmatprep.subr.mxu0 0.0
      %1062 = vmatpush1.msra.mxu0 0.0
      %1063 = vmatprep.subr.mxu0 0.0
      %1064 = vmatpush1.msra.mxu0 0.0
      %1065 = vmatprep.subr.mxu0 0.0
      %1066 = vmatpush1.msra.mxu0 0.0
      %1067 = vmatprep.subr.mxu0 0.0
      %1068 = vmatpush1.msra.mxu0 0.0
      %1069 = vmatprep.subr.mxu0 0.0
      %1070 = vmatpush1.msra.mxu0 0.0
      %1071 = vmatprep.subr.mxu0 0.0
      %1072 = vmatpush1.msra.mxu0 0.0
      %1073 = vmatprep.subr.mxu0 0.0
      %1074 = vmatpush1.msra.mxu0 0.0
      %1075 = vmatprep.subr.mxu0 0.0
      %1076 = vmatpush1.msra.mxu0 0.0
      %1077 = vmatprep.subr.mxu0 0.0
      %1078 = vmatpush1.msra.mxu0 0.0
      %1079 = vmatprep.subr.mxu0 0.0
      %1080 = vmatpush1.msra.mxu0 0.0
      %1081 = vmatprep.subr.mxu0 0.0
      %1082 = vmatpush1.msra.mxu0 0.0
      %1083 = vmatprep.subr.mxu0 0.0
      %1084 = vmatpush1.msra.mxu0 0.0
      %1085 = vmatprep.subr.mxu0 0.0
      %1086 = vmatpush1.msra.mxu0 0.0
      %1087 = vmatprep.mubr.f32.mxu0 0.0
      %v1088 = vand.u32 %v828, 4294901760
      %v1089 = vsub.f32 %v828, %v1088
      %1090 = vmatmul.mubr.f32.gmra.mrb[0].mxu0 %v1089
      %v1091 = vpop.f32.mrb[0].mxu0
      %v1092 = vadd.f32 %v1008, %v1091
      %v1093 = vpop.f32.mrb[0].mxu0
      %1094 = vmatprep.mubr.f32.mxu0 0.0
      %v1095 = vand.u32 %v831, 4294901760
      %v1096 = vsub.f32 %v831, %v1095
      %1097 = vmatmul.mubr.f32.gmra.mrb[0].mxu0 %v1096
      %v1098 = vpop.f32.mrb[0].mxu0
      %v1099 = vadd.f32 %v1014, %v1098
      %v1100 = vpop.f32.mrb[0].mxu0
      %1101 = vdwg.mxu0
      %1102 = vmatprep.subr.mxu0 0.0
      %v1103 = vand.u32 %v816, 4294901760
      %1104 = vmatpush1.msra.mxu0 %v1103
      %1105 = vmatprep.subr.mxu0 0.0
      %v1106 = vand.u32 %v817, 4294901760
      %1107 = vmatpush1.msra.mxu0 %v1106
      %1108 = vmatprep.subr.mxu0 0.0
      %v1109 = vand.u32 %v835, 4294901760
      %1110 = vmatpush1.msra.mxu0 %v1109
      %1111 = vmatprep.subr.mxu0 0.0
      %1112 = vmatpush1.msra.mxu0 0.0
      %1113 = vmatprep.subr.mxu0 0.0
      %1114 = vmatpush1.msra.mxu0 0.0
      %1115 = vmatprep.subr.mxu0 0.0
      %1116 = vmatpush1.msra.mxu0 0.0
      %1117 = vmatprep.subr.mxu0 0.0
      %1118 = vmatpush1.msra.mxu0 0.0
      %1119 = vmatprep.subr.mxu0 0.0
      %1120 = vmatpush1.msra.mxu0 0.0
      %1121 = vmatprep.subr.mxu0 0.0
      %1122 = vmatpush1.msra.mxu0 0.0
      %1123 = vmatprep.subr.mxu0 0.0
      %1124 = vmatpush1.msra.mxu0 0.0
      %1125 = vmatprep.subr.mxu0 0.0
      %1126 = vmatpush1.msra.mxu0 0.0
      %1127 = vmatprep.subr.mxu0 0.0
      %1128 = vmatpush1.msra.mxu0 0.0
      %1129 = vmatprep.subr.mxu0 0.0
      %1130 = vmatpush1.msra.mxu0 0.0
      %1131 = vmatprep.subr.mxu0 0.0
      %1132 = vmatpush1.msra.mxu0 0.0
      %1133 = vmatprep.subr.mxu0 0.0
      %1134 = vmatpush1.msra.mxu0 0.0
      %1135 = vmatprep.subr.mxu0 0.0
      %1136 = vmatpush1.msra.mxu0 0.0
      %1137 = vmatprep.subr.mxu0 0.0
      %1138 = vmatpush1.msra.mxu0 0.0
      %1139 = vmatprep.subr.mxu0 0.0
      %1140 = vmatpush1.msra.mxu0 0.0
      %1141 = vmatprep.subr.mxu0 0.0
      %1142 = vmatpush1.msra.mxu0 0.0
      %1143 = vmatprep.subr.mxu0 0.0
      %1144 = vmatpush1.msra.mxu0 0.0
      %1145 = vmatprep.subr.mxu0 0.0
      %1146 = vmatpush1.msra.mxu0 0.0
      %1147 = vmatprep.subr.mxu0 0.0
      %1148 = vmatpush1.msra.mxu0 0.0
      %1149 = vmatprep.subr.mxu0 0.0
      %1150 = vmatpush1.msra.mxu0 0.0
      %1151 = vmatprep.subr.mxu0 0.0
      %1152 = vmatpush1.msra.mxu0 0.0
      %1153 = vmatprep.subr.mxu0 0.0
      %1154 = vmatpush1.msra.mxu0 0.0
      %1155 = vmatprep.subr.mxu0 0.0
      %1156 = vmatpush1.msra.mxu0 0.0
      %1157 = vmatprep.subr.mxu0 0.0
      %1158 = vmatpush1.msra.mxu0 0.0
      %1159 = vmatprep.subr.mxu0 0.0
      %1160 = vmatpush1.msra.mxu0 0.0
      %1161 = vmatprep.subr.mxu0 0.0
      %1162 = vmatpush1.msra.mxu0 0.0
      %1163 = vmatprep.subr.mxu0 0.0
      %1164 = vmatpush1.msra.mxu0 0.0
      %1165 = vmatprep.subr.mxu0 0.0
      %1166 = vmatpush1.msra.mxu0 0.0
      %1167 = vmatprep.subr.mxu0 0.0
      %1168 = vmatpush1.msra.mxu0 0.0
      %1169 = vmatprep.mubr.f32.mxu0 0.0
      %v1170 = vand.u32 %v828, 4294901760
      %v1171 = vsub.f32 %v828, %v1170
      %v1172 = vand.u32 %v1171, 4294901760
      %1173 = vmatmul.mubr.f32.gmra.mrb[0].mxu0 %v1172
      %v1174 = vpop.f32.mrb[0].mxu0
      %v1175 = vadd.f32 %v1092, %v1174
      %v1176 = vpop.f32.mrb[0].mxu0
      %1177 = vmatprep.mubr.f32.mxu0 0.0
      %v1178 = vand.u32 %v831, 4294901760
      %v1179 = vsub.f32 %v831, %v1178
      %v1180 = vand.u32 %v1179, 4294901760
      %1181 = vmatmul.mubr.f32.gmra.mrb[0].mxu0 %v1180
      %v1182 = vpop.f32.mrb[0].mxu0
      %v1183 = vadd.f32 %v1099, %v1182
      %v1184 = vpop.f32.mrb[0].mxu0
      %1185 = vdwg.mxu0
      %1186 = vmatprep.subr.mxu0 0.0
      %v1187 = vand.u32 %v816, 4294901760
      %v1188 = vsub.f32 %v816, %v1187
      %v1189 = vand.u32 %v1188, 4294901760
      %1190 = vmatpush1.msra.mxu0 %v1189
      %1191 = vmatprep.subr.mxu0 0.0
      %v1192 = vand.u32 %v817, 4294901760
      %v1193 = vsub.f32 %v817, %v1192
      %v1194 = vand.u32 %v1193, 4294901760
      %1195 = vmatpush1.msra.mxu0 %v1194
      %1196 = vmatprep.subr.mxu0 0.0
      %v1197 = vand.u32 %v835, 4294901760
      %v1198 = vsub.f32 %v835, %v1197
      %v1199 = vand.u32 %v1198, 4294901760
      %1200 = vmatpush1.msra.mxu0 %v1199
      %1201 = vmatprep.subr.mxu0 0.0
      %1202 = vmatpush1.msra.mxu0 0.0
      %1203 = vmatprep.subr.mxu0 0.0
      %1204 = vmatpush1.msra.mxu0 0.0
      %1205 = vmatprep.subr.mxu0 0.0
      %1206 = vmatpush1.msra.mxu0 0.0
      %1207 = vmatprep.subr.mxu0 0.0
      %1208 = vmatpush1.msra.mxu0 0.0
      %1209 = vmatprep.subr.mxu0 0.0
      %1210 = vmatpush1.msra.mxu0 0.0
      %1211 = vmatprep.subr.mxu0 0.0
      %1212 = vmatpush1.msra.mxu0 0.0
      %1213 = vmatprep.subr.mxu0 0.0
      %1214 = vmatpush1.msra.mxu0 0.0
      %1215 = vmatprep.subr.mxu0 0.0
      %1216 = vmatpush1.msra.mxu0 0.0
      %1217 = vmatprep.subr.mxu0 0.0
      %1218 = vmatpush1.msra.mxu0 0.0
      %1219 = vmatprep.subr.mxu0 0.0
      %1220 = vmatpush1.msra.mxu0 0.0
      %1221 = vmatprep.subr.mxu0 0.0
      %1222 = vmatpush1.msra.mxu0 0.0
      %1223 = vmatprep.subr.mxu0 0.0
      %1224 = vmatpush1.msra.mxu0 0.0
      %1225 = vmatprep.subr.mxu0 0.0
      %1226 = vmatpush1.msra.mxu0 0.0
      %1227 = vmatprep.subr.mxu0 0.0
      %1228 = vmatpush1.msra.mxu0 0.0
      %1229 = vmatprep.subr.mxu0 0.0
      %1230 = vmatpush1.msra.mxu0 0.0
      %1231 = vmatprep.subr.mxu0 0.0
      %1232 = vmatpush1.msra.mxu0 0.0
      %1233 = vmatprep.subr.mxu0 0.0
      %1234 = vmatpush1.msra.mxu0 0.0
      %1235 = vmatprep.subr.mxu0 0.0
      %1236 = vmatpush1.msra.mxu0 0.0
      %1237 = vmatprep.subr.mxu0 0.0
      %1238 = vmatpush1.msra.mxu0 0.0
      %1239 = vmatprep.subr.mxu0 0.0
      %1240 = vmatpush1.msra.mxu0 0.0
      %1241 = vmatprep.subr.mxu0 0.0
      %1242 = vmatpush1.msra.mxu0 0.0
      %1243 = vmatprep.subr.mxu0 0.0
      %1244 = vmatpush1.msra.mxu0 0.0
      %1245 = vmatprep.subr.mxu0 0.0
      %1246 = vmatpush1.msra.mxu0 0.0
      %1247 = vmatprep.subr.mxu0 0.0
      %1248 = vmatpush1.msra.mxu0 0.0
      %1249 = vmatprep.subr.mxu0 0.0
      %1250 = vmatpush1.msra.mxu0 0.0
      %1251 = vmatprep.subr.mxu0 0.0
      %1252 = vmatpush1.msra.mxu0 0.0
      %1253 = vmatprep.subr.mxu0 0.0
      %1254 = vmatpush1.msra.mxu0 0.0
      %1255 = vmatprep.subr.mxu0 0.0
      %1256 = vmatpush1.msra.mxu0 0.0
      %1257 = vmatprep.subr.mxu0 0.0
      %1258 = vmatpush1.msra.mxu0 0.0
      %1259 = vmatprep.mubr.f32.mxu0 0.0
      %v1260 = vand.u32 %v828, 4294901760
      %1261 = vmatmul.mubr.f32.gmra.mrb[0].mxu0 %v1260
      %v1262 = vpop.f32.mrb[0].mxu0
      %v1263 = vadd.f32 %v1175, %v1262
      %v1264 = vpop.f32.mrb[0].mxu0
      %1265 = vmatprep.mubr.f32.mxu0 0.0
      %v1266 = vand.u32 %v831, 4294901760
      %1267 = vmatmul.mubr.f32.gmra.mrb[0].mxu0 %v1266
      %v1268 = vpop.f32.mrb[0].mxu0
      %v1269 = vadd.f32 %v1183, %v1268
      %v1270 = vpop.f32.mrb[0].mxu0
      %1271 = vdwg.mxu0
      %1272 = vmatprep.subr.mxu0 0.0
      %v1273 = vand.u32 %v816, 4294901760
      %1274 = vmatpush1.msra.mxu0 %v1273
      %1275 = vmatprep.subr.mxu0 0.0
      %v1276 = vand.u32 %v817, 4294901760
      %1277 = vmatpush1.msra.mxu0 %v1276
      %1278 = vmatprep.subr.mxu0 0.0
      %v1279 = vand.u32 %v835, 4294901760
      %1280 = vmatpush1.msra.mxu0 %v1279
      %1281 = vmatprep.subr.mxu0 0.0
      %1282 = vmatpush1.msra.mxu0 0.0
      %1283 = vmatprep.subr.mxu0 0.0
      %1284 = vmatpush1.msra.mxu0 0.0
      %1285 = vmatprep.subr.mxu0 0.0
      %1286 = vmatpush1.msra.mxu0 0.0
      %1287 = vmatprep.subr.mxu0 0.0
      %1288 = vmatpush1.msra.mxu0 0.0
      %1289 = vmatprep.subr.mxu0 0.0
      %1290 = vmatpush1.msra.mxu0 0.0
      %1291 = vmatprep.subr.mxu0 0.0
      %1292 = vmatpush1.msra.mxu0 0.0
      %1293 = vmatprep.subr.mxu0 0.0
      %1294 = vmatpush1.msra.mxu0 0.0
      %1295 = vmatprep.subr.mxu0 0.0
      %1296 = vmatpush1.msra.mxu0 0.0
      %1297 = vmatprep.subr.mxu0 0.0
      %1298 = vmatpush1.msra.mxu0 0.0
      %1299 = vmatprep.subr.mxu0 0.0
      %1300 = vmatpush1.msra.mxu0 0.0
      %1301 = vmatprep.subr.mxu0 0.0
      %1302 = vmatpush1.msra.mxu0 0.0
      %1303 = vmatprep.subr.mxu0 0.0
      %1304 = vmatpush1.msra.mxu0 0.0
      %1305 = vmatprep.subr.mxu0 0.0
      %1306 = vmatpush1.msra.mxu0 0.0
      %1307 = vmatprep.subr.mxu0 0.0
      %1308 = vmatpush1.msra.mxu0 0.0
      %1309 = vmatprep.subr.mxu0 0.0
      %1310 = vmatpush1.msra.mxu0 0.0
      %1311 = vmatprep.subr.mxu0 0.0
      %1312 = vmatpush1.msra.mxu0 0.0
      %1313 = vmatprep.subr.mxu0 0.0
      %1314 = vmatpush1.msra.mxu0 0.0
      %1315 = vmatprep.subr.mxu0 0.0
      %1316 = vmatpush1.msra.mxu0 0.0
      %1317 = vmatprep.subr.mxu0 0.0
      %1318 = vmatpush1.msra.mxu0 0.0
      %1319 = vmatprep.subr.mxu0 0.0
      %1320 = vmatpush1.msra.mxu0 0.0
      %1321 = vmatprep.subr.mxu0 0.0
      %1322 = vmatpush1.msra.mxu0 0.0
      %1323 = vmatprep.subr.mxu0 0.0
      %1324 = vmatpush1.msra.mxu0 0.0
      %1325 = vmatprep.subr.mxu0 0.0
      %1326 = vmatpush1.msra.mxu0 0.0
      %1327 = vmatprep.subr.mxu0 0.0
      %1328 = vmatpush1.msra.mxu0 0.0
      %1329 = vmatprep.subr.mxu0 0.0
      %1330 = vmatpush1.msra.mxu0 0.0
      %1331 = vmatprep.subr.mxu0 0.0
      %1332 = vmatpush1.msra.mxu0 0.0
      %1333 = vmatprep.subr.mxu0 0.0
      %1334 = vmatpush1.msra.mxu0 0.0
      %1335 = vmatprep.subr.mxu0 0.0
      %1336 = vmatpush1.msra.mxu0 0.0
      %1337 = vmatprep.subr.mxu0 0.0
      %1338 = vmatpush1.msra.mxu0 0.0
      %1339 = vmatprep.mubr.f32.mxu0 0.0
      %v1340 = vand.u32 %v828, 4294901760
      %1341 = vmatmul.mubr.f32.gmra.mrb[0].mxu0 %v1340
      %v1342 = vpop.f32.mrb[0].mxu0
      %v1343 = vadd.f32 %v1263, %v1342
      %v1344 = vpop.f32.mrb[0].mxu0
      %1345 = vmatprep.mubr.f32.mxu0 0.0
      %v1346 = vand.u32 %v831, 4294901760
      %1347 = vmatmul.mubr.f32.gmra.mrb[0].mxu0 %v1346
      %v1348 = vpop.f32.mrb[0].mxu0
      %v1349 = vadd.f32 %v1269, %v1348
      %v1350 = vpop.f32.mrb[0].mxu0
      %1351 = vdwg.mxu0
      %vm1352 = vcmp.gt.f32.partialorder %v1343, 0.0
      %vm1353 = vcmp.gt.f32.partialorder %v1349, 0.0
      %v1354 = vmul.f32 %v1343, 1.442695
      %v1355 = vpow.pop %v1354
      %v1356 = vmul.f32 %v1349, 1.442695
      %v1357 = vpow.pop %v1356
      %v1358 = vsub.f32 %v1355, 1.0
      %v1359 = vsub.f32 %v1357, 1.0
      %v1360 = vmul.f32 %v1358, 1.6732632
      %v1361 = vmul.f32 %v1359, 1.6732632
      %v1362 = vsel %vm1352, %v1343, %v1360
      %v1363 = vsel %vm1353, %v1349, %v1361
      %v1364 = vmul.f32 %v1362, 1.050701
      %v1365 = vmul.f32 %v1363, 1.050701
      %v1366 = vld [vmem:[%s5] sm:$0xff]
      %v1367 = vld [vmem:[%s5 + $0x8] sm:$0x3f]
      %v1368 = vld [vmem:[%s6] sm:$0x1]
      %v1370 = vlaneseq
      %v1371 = vshrl.u32 %v1370, 7
      %v1372 = vsub.s32 0, %v1371
      %v1373 = vrot.slane %v1368, %v1372
      %vm1375 = vcmask 113664
      %v1377 = vsel %vm1375, %v1364, 0
      %v1380 = vsel %vm1375, %v1365, 0
      %vm1382 = vcmask 1045504
      %v1384 = vsel %vm1382, %v1367, 0
      %1386 = vmatprep.subr.mxu0 0.0
      %v1387 = vand.u32 %v1366, 4294901760
      %1388 = vmatpush1.msra.mxu0 %v1387
      %1389 = vmatprep.subr.mxu0 0.0
      %v1390 = vand.u32 %v1384, 4294901760
      %1391 = vmatpush1.msra.mxu0 %v1390
      %1392 = vmatprep.subr.mxu0 0.0
      %1393 = vmatpush1.msra.mxu0 0.0
      %1394 = vmatprep.subr.mxu0 0.0
      %1395 = vmatpush1.msra.mxu0 0.0
      %1396 = vmatprep.subr.mxu0 0.0
      %1397 = vmatpush1.msra.mxu0 0.0
      %1398 = vmatprep.subr.mxu0 0.0
      %1399 = vmatpush1.msra.mxu0 0.0
      %1400 = vmatprep.subr.mxu0 0.0
      %1401 = vmatpush1.msra.mxu0 0.0
      %1402 = vmatprep.subr.mxu0 0.0
      %1403 = vmatpush1.msra.mxu0 0.0
      %1404 = vmatprep.subr.mxu0 0.0
      %1405 = vmatpush1.msra.mxu0 0.0
      %1406 = vmatprep.subr.mxu0 0.0
      %1407 = vmatpush1.msra.mxu0 0.0
      %1408 = vmatprep.subr.mxu0 0.0
      %1409 = vmatpush1.msra.mxu0 0.0
      %1410 = vmatprep.subr.mxu0 0.0
      %1411 = vmatpush1.msra.mxu0 0.0
      %1412 = vmatprep.subr.mxu0 0.0
      %1413 = vmatpush1.msra.mxu0 0.0
      %1414 = vmatprep.subr.mxu0 0.0
      %1415 = vmatpush1.msra.mxu0 0.0
      %1416 = vmatprep.subr.mxu0 0.0
      %1417 = vmatpush1.msra.mxu0 0.0
      %1418 = vmatprep.subr.mxu0 0.0
      %1419 = vmatpush1.msra.mxu0 0.0
      %1420 = vmatprep.subr.mxu0 0.0
      %1421 = vmatpush1.msra.mxu0 0.0
      %1422 = vmatprep.subr.mxu0 0.0
      %1423 = vmatpush1.msra.mxu0 0.0
      %1424 = vmatprep.subr.mxu0 0.0
      %1425 = vmatpush1.msra.mxu0 0.0
      %1426 = vmatprep.subr.mxu0 0.0
      %1427 = vmatpush1.msra.mxu0 0.0
      %1428 = vmatprep.subr.mxu0 0.0
      %1429 = vmatpush1.msra.mxu0 0.0
      %1430 = vmatprep.subr.mxu0 0.0
      %1431 = vmatpush1.msra.mxu0 0.0
      %1432 = vmatprep.subr.mxu0 0.0
      %1433 = vmatpush1.msra.mxu0 0.0
      %1434 = vmatprep.subr.mxu0 0.0
      %1435 = vmatpush1.msra.mxu0 0.0
      %1436 = vmatprep.subr.mxu0 0.0
      %1437 = vmatpush1.msra.mxu0 0.0
      %1438 = vmatprep.subr.mxu0 0.0
      %1439 = vmatpush1.msra.mxu0 0.0
      %1440 = vmatprep.subr.mxu0 0.0
      %1441 = vmatpush1.msra.mxu0 0.0
      %1442 = vmatprep.subr.mxu0 0.0
      %1443 = vmatpush1.msra.mxu0 0.0
      %1444 = vmatprep.subr.mxu0 0.0
      %1445 = vmatpush1.msra.mxu0 0.0
      %1446 = vmatprep.subr.mxu0 0.0
      %1447 = vmatpush1.msra.mxu0 0.0
      %1448 = vmatprep.subr.mxu0 0.0
      %1449 = vmatpush1.msra.mxu0 0.0
      %1450 = vmatprep.subr.mxu0 0.0
      %1451 = vmatpush1.msra.mxu0 0.0
      %1452 = vmatprep.mubr.f32.mxu0 0.0
      %v1453 = vand.u32 %v1377, 4294901760
      %v1454 = vsub.f32 %v1377, %v1453
      %v1455 = vand.u32 %v1454, 4294901760
      %v1456 = vsub.f32 %v1454, %v1455
      %v1457 = vand.u32 %v1456, 4294901760
      %1458 = vmatmul.mubr.f32.gmra.mrb[0].mxu0 %v1457
      %v1459 = vpop.f32.mrb[0].mxu0
      %v1460 = vadd.f32 %v1373, %v1459
      %v1461 = vpop.f32.mrb[0].mxu0
      %1462 = vmatprep.mubr.f32.mxu0 0.0
      %v1463 = vand.u32 %v1380, 4294901760
      %v1464 = vsub.f32 %v1380, %v1463
      %v1465 = vand.u32 %v1464, 4294901760
      %v1466 = vsub.f32 %v1464, %v1465
      %v1467 = vand.u32 %v1466, 4294901760
      %1468 = vmatmul.mubr.f32.gmra.mrb[0].mxu0 %v1467
      %v1469 = vpop.f32.mrb[0].mxu0
      %v1470 = vadd.f32 %v1373, %v1469
      %v1471 = vpop.f32.mrb[0].mxu0
      %1472 = vdwg.mxu0
      %1473 = vmatprep.subr.mxu0 0.0
      %v1474 = vand.u32 %v1366, 4294901760
      %v1475 = vsub.f32 %v1366, %v1474
      %v1476 = vand.u32 %v1475, 4294901760
      %v1477 = vsub.f32 %v1475, %v1476
      %v1478 = vand.u32 %v1477, 4294901760
      %1479 = vmatpush1.msra.mxu0 %v1478
      %1480 = vmatprep.subr.mxu0 0.0
      %v1481 = vand.u32 %v1384, 4294901760
      %v1482 = vsub.f32 %v1384, %v1481
      %v1483 = vand.u32 %v1482, 4294901760
      %v1484 = vsub.f32 %v1482, %v1483
      %v1485 = vand.u32 %v1484, 4294901760
      %1486 = vmatpush1.msra.mxu0 %v1485
      %1487 = vmatprep.subr.mxu0 0.0
      %1488 = vmatpush1.msra.mxu0 0.0
      %1489 = vmatprep.subr.mxu0 0.0
      %1490 = vmatpush1.msra.mxu0 0.0
      %1491 = vmatprep.subr.mxu0 0.0
      %1492 = vmatpush1.msra.mxu0 0.0
      %1493 = vmatprep.subr.mxu0 0.0
      %1494 = vmatpush1.msra.mxu0 0.0
      %1495 = vmatprep.subr.mxu0 0.0
      %1496 = vmatpush1.msra.mxu0 0.0
      %1497 = vmatprep.subr.mxu0 0.0
      %1498 = vmatpush1.msra.mxu0 0.0
      %1499 = vmatprep.subr.mxu0 0.0
      %1500 = vmatpush1.msra.mxu0 0.0
      %1501 = vmatprep.subr.mxu0 0.0
      %1502 = vmatpush1.msra.mxu0 0.0
      %1503 = vmatprep.subr.mxu0 0.0
      %1504 = vmatpush1.msra.mxu0 0.0
      %1505 = vmatprep.subr.mxu0 0.0
      %1506 = vmatpush1.msra.mxu0 0.0
      %1507 = vmatprep.subr.mxu0 0.0
      %1508 = vmatpush1.msra.mxu0 0.0
      %1509 = vmatprep.subr.mxu0 0.0
      %1510 = vmatpush1.msra.mxu0 0.0
      %1511 = vmatprep.subr.mxu0 0.0
      %1512 = vmatpush1.msra.mxu0 0.0
      %1513 = vmatprep.subr.mxu0 0.0
      %1514 = vmatpush1.msra.mxu0 0.0
      %1515 = vmatprep.subr.mxu0 0.0
      %1516 = vmatpush1.msra.mxu0 0.0
      %1517 = vmatprep.subr.mxu0 0.0
      %1518 = vmatpush1.msra.mxu0 0.0
      %1519 = vmatprep.subr.mxu0 0.0
      %1520 = vmatpush1.msra.mxu0 0.0
      %1521 = vmatprep.subr.mxu0 0.0
      %1522 = vmatpush1.msra.mxu0 0.0
      %1523 = vmatprep.subr.mxu0 0.0
      %1524 = vmatpush1.msra.mxu0 0.0
      %1525 = vmatprep.subr.mxu0 0.0
      %1526 = vmatpush1.msra.mxu0 0.0
      %1527 = vmatprep.subr.mxu0 0.0
      %1528 = vmatpush1.msra.mxu0 0.0
      %1529 = vmatprep.subr.mxu0 0.0
      %1530 = vmatpush1.msra.mxu0 0.0
      %1531 = vmatprep.subr.mxu0 0.0
      %1532 = vmatpush1.msra.mxu0 0.0
      %1533 = vmatprep.subr.mxu0 0.0
      %1534 = vmatpush1.msra.mxu0 0.0
      %1535 = vmatprep.subr.mxu0 0.0
      %1536 = vmatpush1.msra.mxu0 0.0
      %1537 = vmatprep.subr.mxu0 0.0
      %1538 = vmatpush1.msra.mxu0 0.0
      %1539 = vmatprep.subr.mxu0 0.0
      %1540 = vmatpush1.msra.mxu0 0.0
      %1541 = vmatprep.subr.mxu0 0.0
      %1542 = vmatpush1.msra.mxu0 0.0
      %1543 = vmatprep.subr.mxu0 0.0
      %1544 = vmatpush1.msra.mxu0 0.0
      %1545 = vmatprep.subr.mxu0 0.0
      %1546 = vmatpush1.msra.mxu0 0.0
      %1547 = vmatprep.mubr.f32.mxu0 0.0
      %v1548 = vand.u32 %v1377, 4294901760
      %1549 = vmatmul.mubr.f32.gmra.mrb[0].mxu0 %v1548
      %v1550 = vpop.f32.mrb[0].mxu0
      %v1551 = vadd.f32 %v1460, %v1550
      %v1552 = vpop.f32.mrb[0].mxu0
      %1553 = vmatprep.mubr.f32.mxu0 0.0
      %v1554 = vand.u32 %v1380, 4294901760
      %1555 = vmatmul.mubr.f32.gmra.mrb[0].mxu0 %v1554
      %v1556 = vpop.f32.mrb[0].mxu0
      %v1557 = vadd.f32 %v1470, %v1556
      %v1558 = vpop.f32.mrb[0].mxu0
      %1559 = vdwg.mxu0
      %1560 = vmatprep.subr.mxu0 0.0
      %v1561 = vand.u32 %v1366, 4294901760
      %v1562 = vsub.f32 %v1366, %v1561
      %1563 = vmatpush1.msra.mxu0 %v1562
      %1564 = vmatprep.subr.mxu0 0.0
      %v1565 = vand.u32 %v1384, 4294901760
      %v1566 = vsub.f32 %v1384, %v1565
      %1567 = vmatpush1.msra.mxu0 %v1566
      %1568 = vmatprep.subr.mxu0 0.0
      %1569 = vmatpush1.msra.mxu0 0.0
      %1570 = vmatprep.subr.mxu0 0.0
      %1571 = vmatpush1.msra.mxu0 0.0
      %1572 = vmatprep.subr.mxu0 0.0
      %1573 = vmatpush1.msra.mxu0 0.0
      %1574 = vmatprep.subr.mxu0 0.0
      %1575 = vmatpush1.msra.mxu0 0.0
      %1576 = vmatprep.subr.mxu0 0.0
      %1577 = vmatpush1.msra.mxu0 0.0
      %1578 = vmatprep.subr.mxu0 0.0
      %1579 = vmatpush1.msra.mxu0 0.0
      %1580 = vmatprep.subr.mxu0 0.0
      %1581 = vmatpush1.msra.mxu0 0.0
      %1582 = vmatprep.subr.mxu0 0.0
      %1583 = vmatpush1.msra.mxu0 0.0
      %1584 = vmatprep.subr.mxu0 0.0
      %1585 = vmatpush1.msra.mxu0 0.0
      %1586 = vmatprep.subr.mxu0 0.0
      %1587 = vmatpush1.msra.mxu0 0.0
      %1588 = vmatprep.subr.mxu0 0.0
      %1589 = vmatpush1.msra.mxu0 0.0
      %1590 = vmatprep.subr.mxu0 0.0
      %1591 = vmatpush1.msra.mxu0 0.0
      %1592 = vmatprep.subr.mxu0 0.0
      %1593 = vmatpush1.msra.mxu0 0.0
      %1594 = vmatprep.subr.mxu0 0.0
      %1595 = vmatpush1.msra.mxu0 0.0
      %1596 = vmatprep.subr.mxu0 0.0
      %1597 = vmatpush1.msra.mxu0 0.0
      %1598 = vmatprep.subr.mxu0 0.0
      %1599 = vmatpush1.msra.mxu0 0.0
      %1600 = vmatprep.subr.mxu0 0.0
      %1601 = vmatpush1.msra.mxu0 0.0
      %1602 = vmatprep.subr.mxu0 0.0
      %1603 = vmatpush1.msra.mxu0 0.0
      %1604 = vmatprep.subr.mxu0 0.0
      %1605 = vmatpush1.msra.mxu0 0.0
      %1606 = vmatprep.subr.mxu0 0.0
      %1607 = vmatpush1.msra.mxu0 0.0
      %1608 = vmatprep.subr.mxu0 0.0
      %1609 = vmatpush1.msra.mxu0 0.0
      %1610 = vmatprep.subr.mxu0 0.0
      %1611 = vmatpush1.msra.mxu0 0.0
      %1612 = vmatprep.subr.mxu0 0.0
      %1613 = vmatpush1.msra.mxu0 0.0
      %1614 = vmatprep.subr.mxu0 0.0
      %1615 = vmatpush1.msra.mxu0 0.0
      %1616 = vmatprep.subr.mxu0 0.0
      %1617 = vmatpush1.msra.mxu0 0.0
      %1618 = vmatprep.subr.mxu0 0.0
      %1619 = vmatpush1.msra.mxu0 0.0
      %1620 = vmatprep.subr.mxu0 0.0
      %1621 = vmatpush1.msra.mxu0 0.0
      %1622 = vmatprep.subr.mxu0 0.0
      %1623 = vmatpush1.msra.mxu0 0.0
      %1624 = vmatprep.subr.mxu0 0.0
      %1625 = vmatpush1.msra.mxu0 0.0
      %1626 = vmatprep.subr.mxu0 0.0
      %1627 = vmatpush1.msra.mxu0 0.0
      %1628 = vmatprep.mubr.f32.mxu0 0.0
      %v1629 = vand.u32 %v1377, 4294901760
      %v1630 = vsub.f32 %v1377, %v1629
      %1631 = vmatmul.mubr.f32.gmra.mrb[0].mxu0 %v1630
      %v1632 = vpop.f32.mrb[0].mxu0
      %v1633 = vadd.f32 %v1551, %v1632
      %v1634 = vpop.f32.mrb[0].mxu0
      %1635 = vmatprep.mubr.f32.mxu0 0.0
      %v1636 = vand.u32 %v1380, 4294901760
      %v1637 = vsub.f32 %v1380, %v1636
      %1638 = vmatmul.mubr.f32.gmra.mrb[0].mxu0 %v1637
      %v1639 = vpop.f32.mrb[0].mxu0
      %v1640 = vadd.f32 %v1557, %v1639
      %v1641 = vpop.f32.mrb[0].mxu0
      %1642 = vdwg.mxu0
      %1643 = vmatprep.subr.mxu0 0.0
      %v1644 = vand.u32 %v1366, 4294901760
      %1645 = vmatpush1.msra.mxu0 %v1644
      %1646 = vmatprep.subr.mxu0 0.0
      %v1647 = vand.u32 %v1384, 4294901760
      %1648 = vmatpush1.msra.mxu0 %v1647
      %1649 = vmatprep.subr.mxu0 0.0
      %1650 = vmatpush1.msra.mxu0 0.0
      %1651 = vmatprep.subr.mxu0 0.0
      %1652 = vmatpush1.msra.mxu0 0.0
      %1653 = vmatprep.subr.mxu0 0.0
      %1654 = vmatpush1.msra.mxu0 0.0
      %1655 = vmatprep.subr.mxu0 0.0
      %1656 = vmatpush1.msra.mxu0 0.0
      %1657 = vmatprep.subr.mxu0 0.0
      %1658 = vmatpush1.msra.mxu0 0.0
      %1659 = vmatprep.subr.mxu0 0.0
      %1660 = vmatpush1.msra.mxu0 0.0
      %1661 = vmatprep.subr.mxu0 0.0
      %1662 = vmatpush1.msra.mxu0 0.0
      %1663 = vmatprep.subr.mxu0 0.0
      %1664 = vmatpush1.msra.mxu0 0.0
      %1665 = vmatprep.subr.mxu0 0.0
      %1666 = vmatpush1.msra.mxu0 0.0
      %1667 = vmatprep.subr.mxu0 0.0
      %1668 = vmatpush1.msra.mxu0 0.0
      %1669 = vmatprep.subr.mxu0 0.0
      %1670 = vmatpush1.msra.mxu0 0.0
      %1671 = vmatprep.subr.mxu0 0.0
      %1672 = vmatpush1.msra.mxu0 0.0
      %1673 = vmatprep.subr.mxu0 0.0
      %1674 = vmatpush1.msra.mxu0 0.0
      %1675 = vmatprep.subr.mxu0 0.0
      %1676 = vmatpush1.msra.mxu0 0.0
      %1677 = vmatprep.subr.mxu0 0.0
      %1678 = vmatpush1.msra.mxu0 0.0
      %1679 = vmatprep.subr.mxu0 0.0
      %1680 = vmatpush1.msra.mxu0 0.0
      %1681 = vmatprep.subr.mxu0 0.0
      %1682 = vmatpush1.msra.mxu0 0.0
      %1683 = vmatprep.subr.mxu0 0.0
      %1684 = vmatpush1.msra.mxu0 0.0
      %1685 = vmatprep.subr.mxu0 0.0
      %1686 = vmatpush1.msra.mxu0 0.0
      %1687 = vmatprep.subr.mxu0 0.0
      %1688 = vmatpush1.msra.mxu0 0.0
      %1689 = vmatprep.subr.mxu0 0.0
      %1690 = vmatpush1.msra.mxu0 0.0
      %1691 = vmatprep.subr.mxu0 0.0
      %1692 = vmatpush1.msra.mxu0 0.0
      %1693 = vmatprep.subr.mxu0 0.0
      %1694 = vmatpush1.msra.mxu0 0.0
      %1695 = vmatprep.subr.mxu0 0.0
      %1696 = vmatpush1.msra.mxu0 0.0
      %1697 = vmatprep.subr.mxu0 0.0
      %1698 = vmatpush1.msra.mxu0 0.0
      %1699 = vmatprep.subr.mxu0 0.0
      %1700 = vmatpush1.msra.mxu0 0.0
      %1701 = vmatprep.subr.mxu0 0.0
      %1702 = vmatpush1.msra.mxu0 0.0
      %1703 = vmatprep.subr.mxu0 0.0
      %1704 = vmatpush1.msra.mxu0 0.0
      %1705 = vmatprep.subr.mxu0 0.0
      %1706 = vmatpush1.msra.mxu0 0.0
      %1707 = vmatprep.subr.mxu0 0.0
      %1708 = vmatpush1.msra.mxu0 0.0
      %1709 = vmatprep.mubr.f32.mxu0 0.0
      %v1710 = vand.u32 %v1377, 4294901760
      %v1711 = vsub.f32 %v1377, %v1710
      %v1712 = vand.u32 %v1711, 4294901760
      %1713 = vmatmul.mubr.f32.gmra.mrb[0].mxu0 %v1712
      %v1714 = vpop.f32.mrb[0].mxu0
      %v1715 = vadd.f32 %v1633, %v1714
      %v1716 = vpop.f32.mrb[0].mxu0
      %1717 = vmatprep.mubr.f32.mxu0 0.0
      %v1718 = vand.u32 %v1380, 4294901760
      %v1719 = vsub.f32 %v1380, %v1718
      %v1720 = vand.u32 %v1719, 4294901760
      %1721 = vmatmul.mubr.f32.gmra.mrb[0].mxu0 %v1720
      %v1722 = vpop.f32.mrb[0].mxu0
      %v1723 = vadd.f32 %v1640, %v1722
      %v1724 = vpop.f32.mrb[0].mxu0
      %1725 = vdwg.mxu0
      %1726 = vmatprep.subr.mxu0 0.0
      %v1727 = vand.u32 %v1366, 4294901760
      %v1728 = vsub.f32 %v1366, %v1727
      %v1729 = vand.u32 %v1728, 4294901760
      %1730 = vmatpush1.msra.mxu0 %v1729
      %1731 = vmatprep.subr.mxu0 0.0
      %v1732 = vand.u32 %v1384, 4294901760
      %v1733 = vsub.f32 %v1384, %v1732
      %v1734 = vand.u32 %v1733, 4294901760
      %1735 = vmatpush1.msra.mxu0 %v1734
      %1736 = vmatprep.subr.mxu0 0.0
      %1737 = vmatpush1.msra.mxu0 0.0
      %1738 = vmatprep.subr.mxu0 0.0
      %1739 = vmatpush1.msra.mxu0 0.0
      %1740 = vmatprep.subr.mxu0 0.0
      %1741 = vmatpush1.msra.mxu0 0.0
      %1742 = vmatprep.subr.mxu0 0.0
      %1743 = vmatpush1.msra.mxu0 0.0
      %1744 = vmatprep.subr.mxu0 0.0
      %1745 = vmatpush1.msra.mxu0 0.0
      %1746 = vmatprep.subr.mxu0 0.0
      %1747 = vmatpush1.msra.mxu0 0.0
      %1748 = vmatprep.subr.mxu0 0.0
      %1749 = vmatpush1.msra.mxu0 0.0
      %1750 = vmatprep.subr.mxu0 0.0
      %1751 = vmatpush1.msra.mxu0 0.0
      %1752 = vmatprep.subr.mxu0 0.0
      %1753 = vmatpush1.msra.mxu0 0.0
      %1754 = vmatprep.subr.mxu0 0.0
      %1755 = vmatpush1.msra.mxu0 0.0
      %1756 = vmatprep.subr.mxu0 0.0
      %1757 = vmatpush1.msra.mxu0 0.0
      %1758 = vmatprep.subr.mxu0 0.0
      %1759 = vmatpush1.msra.mxu0 0.0
      %1760 = vmatprep.subr.mxu0 0.0
      %1761 = vmatpush1.msra.mxu0 0.0
      %1762 = vmatprep.subr.mxu0 0.0
      %1763 = vmatpush1.msra.mxu0 0.0
      %1764 = vmatprep.subr.mxu0 0.0
      %1765 = vmatpush1.msra.mxu0 0.0
      %1766 = vmatprep.subr.mxu0 0.0
      %1767 = vmatpush1.msra.mxu0 0.0
      %1768 = vmatprep.subr.mxu0 0.0
      %1769 = vmatpush1.msra.mxu0 0.0
      %1770 = vmatprep.subr.mxu0 0.0
      %1771 = vmatpush1.msra.mxu0 0.0
      %1772 = vmatprep.subr.mxu0 0.0
      %1773 = vmatpush1.msra.mxu0 0.0
      %1774 = vmatprep.subr.mxu0 0.0
      %1775 = vmatpush1.msra.mxu0 0.0
      %1776 = vmatprep.subr.mxu0 0.0
      %1777 = vmatpush1.msra.mxu0 0.0
      %1778 = vmatprep.subr.mxu0 0.0
      %1779 = vmatpush1.msra.mxu0 0.0
      %1780 = vmatprep.subr.mxu0 0.0
      %1781 = vmatpush1.msra.mxu0 0.0
      %1782 = vmatprep.subr.mxu0 0.0
      %1783 = vmatpush1.msra.mxu0 0.0
      %1784 = vmatprep.subr.mxu0 0.0
      %1785 = vmatpush1.msra.mxu0 0.0
      %1786 = vmatprep.subr.mxu0 0.0
      %1787 = vmatpush1.msra.mxu0 0.0
      %1788 = vmatprep.subr.mxu0 0.0
      %1789 = vmatpush1.msra.mxu0 0.0
      %1790 = vmatprep.subr.mxu0 0.0
      %1791 = vmatpush1.msra.mxu0 0.0
      %1792 = vmatprep.subr.mxu0 0.0
      %1793 = vmatpush1.msra.mxu0 0.0
      %1794 = vmatprep.subr.mxu0 0.0
      %1795 = vmatpush1.msra.mxu0 0.0
      %1796 = vmatprep.mubr.f32.mxu0 0.0
      %v1797 = vand.u32 %v1377, 4294901760
      %1798 = vmatmul.mubr.f32.gmra.mrb[0].mxu0 %v1797
      %v1799 = vpop.f32.mrb[0].mxu0
      %v1800 = vadd.f32 %v1715, %v1799
      %v1801 = vpop.f32.mrb[0].mxu0
      %1802 = vmatprep.mubr.f32.mxu0 0.0
      %v1803 = vand.u32 %v1380, 4294901760
      %1804 = vmatmul.mubr.f32.gmra.mrb[0].mxu0 %v1803
      %v1805 = vpop.f32.mrb[0].mxu0
      %v1806 = vadd.f32 %v1723, %v1805
      %v1807 = vpop.f32.mrb[0].mxu0
      %1808 = vdwg.mxu0
      %1809 = vmatprep.subr.mxu0 0.0
      %v1810 = vand.u32 %v1366, 4294901760
      %1811 = vmatpush1.msra.mxu0 %v1810
      %1812 = vmatprep.subr.mxu0 0.0
      %v1813 = vand.u32 %v1384, 4294901760
      %1814 = vmatpush1.msra.mxu0 %v1813
      %1815 = vmatprep.subr.mxu0 0.0
      %1816 = vmatpush1.msra.mxu0 0.0
      %1817 = vmatprep.subr.mxu0 0.0
      %1818 = vmatpush1.msra.mxu0 0.0
      %1819 = vmatprep.subr.mxu0 0.0
      %1820 = vmatpush1.msra.mxu0 0.0
      %1821 = vmatprep.subr.mxu0 0.0
      %1822 = vmatpush1.msra.mxu0 0.0
      %1823 = vmatprep.subr.mxu0 0.0
      %1824 = vmatpush1.msra.mxu0 0.0
      %1825 = vmatprep.subr.mxu0 0.0
      %1826 = vmatpush1.msra.mxu0 0.0
      %1827 = vmatprep.subr.mxu0 0.0
      %1828 = vmatpush1.msra.mxu0 0.0
      %1829 = vmatprep.subr.mxu0 0.0
      %1830 = vmatpush1.msra.mxu0 0.0
      %1831 = vmatprep.subr.mxu0 0.0
      %1832 = vmatpush1.msra.mxu0 0.0
      %1833 = vmatprep.subr.mxu0 0.0
      %1834 = vmatpush1.msra.mxu0 0.0
      %1835 = vmatprep.subr.mxu0 0.0
      %1836 = vmatpush1.msra.mxu0 0.0
      %1837 = vmatprep.subr.mxu0 0.0
      %1838 = vmatpush1.msra.mxu0 0.0
      %1839 = vmatprep.subr.mxu0 0.0
      %1840 = vmatpush1.msra.mxu0 0.0
      %1841 = vmatprep.subr.mxu0 0.0
      %1842 = vmatpush1.msra.mxu0 0.0
      %1843 = vmatprep.subr.mxu0 0.0
      %1844 = vmatpush1.msra.mxu0 0.0
      %1845 = vmatprep.subr.mxu0 0.0
      %1846 = vmatpush1.msra.mxu0 0.0
      %1847 = vmatprep.subr.mxu0 0.0
      %1848 = vmatpush1.msra.mxu0 0.0
      %1849 = vmatprep.subr.mxu0 0.0
      %1850 = vmatpush1.msra.mxu0 0.0
      %1851 = vmatprep.subr.mxu0 0.0
      %1852 = vmatpush1.msra.mxu0 0.0
      %1853 = vmatprep.subr.mxu0 0.0
      %1854 = vmatpush1.msra.mxu0 0.0
      %1855 = vmatprep.subr.mxu0 0.0
      %1856 = vmatpush1.msra.mxu0 0.0
      %1857 = vmatprep.subr.mxu0 0.0
      %1858 = vmatpush1.msra.mxu0 0.0
      %1859 = vmatprep.subr.mxu0 0.0
      %1860 = vmatpush1.msra.mxu0 0.0
      %1861 = vmatprep.subr.mxu0 0.0
      %1862 = vmatpush1.msra.mxu0 0.0
      %1863 = vmatprep.subr.mxu0 0.0
      %1864 = vmatpush1.msra.mxu0 0.0
      %1865 = vmatprep.subr.mxu0 0.0
      %1866 = vmatpush1.msra.mxu0 0.0
      %1867 = vmatprep.subr.mxu0 0.0
      %1868 = vmatpush1.msra.mxu0 0.0
      %1869 = vmatprep.subr.mxu0 0.0
      %1870 = vmatpush1.msra.mxu0 0.0
      %1871 = vmatprep.subr.mxu0 0.0
      %1872 = vmatpush1.msra.mxu0 0.0
      %1873 = vmatprep.subr.mxu0 0.0
      %1874 = vmatpush1.msra.mxu0 0.0
      %1875 = vmatprep.mubr.f32.mxu0 0.0
      %v1876 = vand.u32 %v1377, 4294901760
      %1877 = vmatmul.mubr.f32.gmra.mrb[0].mxu0 %v1876
      %v1878 = vpop.f32.mrb[0].mxu0
      %v1879 = vadd.f32 %v1800, %v1878
      %v1880 = vpop.f32.mrb[0].mxu0
      %1881 = vmatprep.mubr.f32.mxu0 0.0
      %v1882 = vand.u32 %v1380, 4294901760
      %1883 = vmatmul.mubr.f32.gmra.mrb[0].mxu0 %v1882
      %v1884 = vpop.f32.mrb[0].mxu0
      %v1885 = vadd.f32 %v1806, %v1884
      %v1886 = vpop.f32.mrb[0].mxu0
      %1887 = vdwg.mxu0
      %v1888 = vlaneseq
      %v1889 = vand.u32 %v1888, 127
      %vm1890 = vcmp.lt.s32.totalorder %v1889, 10
      %v1891 = vsel %vm1890, 1, 0
      %vm1892 = vcmp.eq.s32.totalorder %v1891, 1
      %v1893 = vsel %vm1892, %v1879, -inf
      %v1894 = vsel %vm1892, %v1885, -inf
      %vm1895 = vcmask 89088
      %v1896 = vsel %vm1895, %v1893, -inf
      %1897 = vmax.xlane.f32.xlu0 %v1896
      %v1898 = vpop.xlane.xlu0 %1897
      %v1899 = vsel %vm1895, %v1894, -inf
      %1900 = vmax.xlane.f32.xlu0 %v1899
      %v1901 = vpop.xlane.xlu0 %1900
      %v1902 = vsub.f32 %v1893, %v1898
      %v1903 = vsub.f32 %v1894, %v1901
      %v1904 = vmul.f32 %v1902, 1.442695
      %v1905 = vpow.pop %v1904
      %v1906 = vmul.f32 %v1903, 1.442695
      %v1907 = vpow.pop %v1906
      %v1908 = vsel %vm1895, %v1905, 0.0
      %1909 = vadd.xlane.f32.xlu0 %v1908
      %v1910 = vpop.xlane.xlu0 %1909
      %v1911 = vsel %vm1895, %v1907, 0.0
      %1912 = vadd.xlane.f32.xlu0 %v1911
      %v1913 = vpop.xlane.xlu0 %1912
      %v1914 = vrcp.pop %v1910
      %v1915 = vmul.f32 %v1905, %v1914
      %v1916 = vrcp.pop %v1913
      %v1917 = vmul.f32 %v1907, %v1916
      %v1918 = vsel %vm1892, %v1915, %v1879
      %v1919 = vsel %vm1892, %v1917, %v1885
      %1920 = vst.msk [vmem:[%s280] sm:$0xff] %vm1895, %v1918
      %1921 = vst.msk [vmem:[%s280 + $0x8] sm:$0xff] %vm1895, %v1919
      %s1922 = smul.u32 2, %s18
      %p1923 = scmp.lt.s32.totalorder %s1922, 3
      %s1924 = scalar_select %p1923, %s1922, 3
      %s1925 = smul.addr %s1924, 8
      %s1926 = scalar_lea.vmem %s7, %s1925
      // Predicated region
      $region49: #{tpu_custom_call.1} parent=47 // pred_check
        %p1927 = pneg %p188
      $region50: #{tpu_custom_call.1} parent=47 // pred_check_branch
        %1929 = sbr.rel (%p1927) target = $region52
      $region51: #{tpu_custom_call.1} parent=47 // pred_region
        %s1930 = smul.u32 2, %s18
      $region52: #{tpu_custom_call.1} parent=47 // pred_fallthru
        _
    $region48: #{tpu_custom_call.1} parent=5 // pred_fallthru
      _
    %p1931 = scmp.le.s32.totalorder 2, %s13
    // Predicated region
    $region53: #{tpu_custom_call.1} parent=5 // pred_check
      %p1932 = pneg %p1931
    $region54: #{tpu_custom_call.1} parent=5 // pred_check_branch
      %1934 = sbr.rel (%p1932) target = $region56
    $region55: #{tpu_custom_call.1} parent=5 // pred_region
      %s1935 = ssub.s32 %s13, 2
      // Predicated region
      $region57: #{tpu_custom_call.1} parent=55 // pred_check
        %p1936 = pneg %p194
      $region58: #{tpu_custom_call.1} parent=55 // pred_check_branch
        %1938 = sbr.rel (%p1936) target = $region60
      $region59: #{tpu_custom_call.1} parent=55 // pred_region
        %s1939 = smul.u32 2, %s19
        %p1940 = scmp.lt.s32.totalorder %s1939, 3
        %s1941 = scalar_select %p1940, %s1939, 3
        %s1942 = smul.addr %s1941, 8
        %s1943 = scalar_lea.vmem %s7, %s1942
      $region60: #{tpu_custom_call.1} parent=55 // pred_fallthru
        _
    $region56: #{tpu_custom_call.1} parent=5 // pred_fallthru
      _
  $region6: #{tpu_custom_call.1} parent=0 // loop_footer
    %s17 = sadd.s32 1, %s13
  $region7: #{tpu_custom_call.1} parent=0 // loop_footer_branch
    %12 = sbr.rel target = $region3
  $region8: #{tpu_custom_call.1} parent=0 // loop_exit
    _

</llo_original>
